<compile_context>
chip_gen: v7x
topology: tpu7x:2x2x1
jax: 0.10.0
libtpu: 0.0.40
codegen_flags: <defaults>
</compile_context>

<pallas_src>
import jax
import jax.numpy as jnp
from jax.experimental import pallas as pl
from jax.experimental.pallas import tpu as pltpu

# ---- model hyperparameters (from the PyTorch module) -----------------------
DIM_D = 5          # dim_d
DIM_F = 1          # len(['Close'])
D_IN = DIM_D * DIM_F
H = 8              # hidden size
N_LAYERS = 2       # num LSTM layers


# ---------------------------------------------------------------------------
# Pallas kernel: full forward pass (LSTM over time + ReLU + Linear head)
# Kernel gate-column layout is [i | f | o | g]; i/f/o columns pre-scaled by 0.5
# at weight-prep time so gates activate with a single tanh (sigmoid identity).
# ---------------------------------------------------------------------------
def stock_predictor_kernel(x_ref,                       # (B, T, D_IN)
                           wih0_ref, whh0_ref, b0_ref,  # (D_IN,4H), (H,4H), (1,4H)
                           w1_ref, b1_ref,              # (2H,4H),   (1,4H)  [Wih1;Whh1] stacked
                           wlin_ref, blin_ref,          # (H,DIM_D), (1,DIM_D)
                           out_ref):                    # (B, DIM_D)
    B, T, _ = x_ref.shape
    Hh = whh0_ref.shape[0]
    G = 4 * Hh

    whh0 = whh0_ref[...]
    w1 = w1_ref[...]
    # Hoist the (1,4H)->(B,4H) bias broadcast out of the unrolled loop.
    b1 = jnp.broadcast_to(b1_ref[...], (B, G))

    # --- layer-0 input projection for ALL timesteps in one MXU dot ---
    x_flat = x_ref[...].reshape(B * T, D_IN)                        # (B*T, D_IN)
    gx_flat = (jnp.dot(x_flat, wih0_ref[...],
                       preferred_element_type=jnp.float32)
               + b0_ref[...])                                       # (B*T, 4H), bias folded
    gates_x = gx_flat.reshape(B, T, G)                              # (B, T, 4H)

    def activate(gates):
        # gate columns: [i | f | o | g]; i/f/o pre-activations are already x/2
        # (0.5 folded into weights), so sigmoid(x) == 0.5*tanh(x/2) + 0.5.
        t = jnp.tanh(gates)                                         # ONE EUP push over 4H lanes
        ifo = 0.5 * t[:, :3 * Hh] + 0.5
        i_g = ifo[:, 0 * Hh:1 * Hh]
        f_g = ifo[:, 1 * Hh:2 * Hh]
        o_g = ifo[:, 2 * Hh:3 * Hh]
        g_g = t[:, 3 * Hh:]
        return i_g, f_g, o_g, g_g

    h0 = c0 = h1 = c1 = jnp.zeros((B, Hh), jnp.float32)

    # --- fully unrolled time loop (T is static) ---
    for t in range(T):
        # layer 0: only the recurrent matmul remains in the loop
        g0 = gates_x[:, t, :] + jnp.dot(h0, whh0,
                                        preferred_element_type=jnp.float32)
        i0, f0, o0, gg0 = activate(g0)
        c0 = f0 * c0 + i0 * gg0
        h0 = o0 * jnp.tanh(c0)

        # layer 1: fused [input | recurrent] matmul
        xh = jnp.concatenate([h0, h1], axis=1)                      # (B, 2H)
        g1 = jnp.dot(xh, w1, preferred_element_type=jnp.float32) + b1
        i1, f1, o1, gg1 = activate(g1)
        c1 = f1 * c1 + i1 * gg1
        h1 = o1 * jnp.tanh(c1)

    # head: Flatten (no-op on (B, H)) -> ReLU -> Linear(H, DIM_D)
    hidden = jnp.maximum(h1, 0.0)
    out_ref[...] = (jnp.dot(hidden, wlin_ref[...],
                            preferred_element_type=jnp.float32)
                    + blin_ref[...])


def stock_predictor_forward(x, kparams):
    """x: (B, T, DIM_D, DIM_F) float32 -> (B, DIM_D) float32."""
    B, T = x.shape[0], x.shape[1]
    # glue: reshape (B,T,dim_d,dim_f) -> (B,T,D_IN); NO transpose
    x2 = x.reshape(B, T, -1).astype(jnp.float32)

    (wih0, whh0, b0, w1, b1, wlin, blin) = kparams

    def full_spec(shape):
        nd = len(shape)
        return pl.BlockSpec(shape, lambda i, _nd=nd: (0,) * _nd)

    return pl.pallas_call(
        stock_predictor_kernel,
        out_shape=jax.ShapeDtypeStruct((B, DIM_D), jnp.float32),
        grid=(1,),
        in_specs=[
            full_spec(x2.shape),
            full_spec(wih0.shape), full_spec(whh0.shape), full_spec(b0.shape),
            full_spec(w1.shape), full_spec(b1.shape),
            full_spec(wlin.shape), full_spec(blin.shape),
        ],
        out_specs=full_spec((B, DIM_D)),
        compiler_params=pltpu.CompilerParams(
            dimension_semantics=("arbitrary",)),
    )(x2, wih0, whh0, b0, w1, b1, wlin, blin)


# ---------------------------------------------------------------------------
# Deterministic "PyTorch-style" raw parameters: U(-1/sqrt(H), 1/sqrt(H)),
# W_ih: (4H, in), W_hh: (4H, H), gate row order [i; f; g; o].
# ---------------------------------------------------------------------------
def init_raw_params(key):
    k = 1.0 / jnp.sqrt(jnp.float32(H))
    keys = jax.random.split(key, 10)
    u = lambda kk, shape: jax.random.uniform(kk, shape, jnp.float32, -k, k)

    w_ih0 = u(keys[0], (4 * H, D_IN))
    w_hh0 = u(keys[1], (4 * H, H))
    b_ih0 = u(keys[2], (4 * H,))
    b_hh0 = u(keys[3], (4 * H,))
    w_ih1 = u(keys[4], (4 * H, H))
    w_hh1 = u(keys[5], (4 * H, H))
    b_ih1 = u(keys[6], (4 * H,))
    b_hh1 = u(keys[7], (4 * H,))
    w_lin = u(keys[8], (DIM_D, H))
    b_lin = u(keys[9], (DIM_D,))
    return (w_ih0, w_hh0, b_ih0, b_hh0,
            w_ih1, w_hh1, b_ih1, b_hh1,
            w_lin, b_lin)


def prepare_kernel_params(raw):
    """Pre-transpose, fold biases, stack layer-1 weights, reorder gates
    [i|f|g|o]->[i|f|o|g], and fold the 0.5 sigmoid-via-tanh prescale into the
    i|f|o weight/bias columns."""
    (w_ih0, w_hh0, b_ih0, b_hh0,
     w_ih1, w_hh1, b_ih1, b_hh1,
     w_lin, b_lin) = raw

    def reorder(w):  # columns [i|f|g|o] -> [i|f|o|g] along last axis (size 4H)
        return jnp.concatenate([w[..., :2 * H], w[..., 3 * H:], w[..., 2 * H:3 * H]],
                               axis=-1)

    def fold_half(w):  # scale i|f|o columns (first 3H) by 0.5; leave g columns
        return jnp.concatenate([0.5 * w[..., :3 * H], w[..., 3 * H:]], axis=-1)

    prep = lambda w: fold_half(reorder(w))

    wih0_k = prep(w_ih0.T)                                       # (D_IN, 4H)
    whh0_k = prep(w_hh0.T)                                       # (H, 4H)
    b0_k = prep((b_ih0 + b_hh0).reshape(1, 4 * H))               # (1, 4H)

    w1_k = prep(jnp.concatenate([w_ih1.T, w_hh1.T], axis=0))     # (2H, 4H) stacked [Wih1; Whh1]
    b1_k = prep((b_ih1 + b_hh1).reshape(1, 4 * H))               # (1, 4H)

    wlin_k = w_lin.T                                             # (H, DIM_D)
    blin_k = b_lin.reshape(1, DIM_D)                             # (1, DIM_D)
    return (wih0_k, whh0_k, b0_k, w1_k, b1_k, wlin_k, blin_k)


# ---------------------------------------------------------------------------
# Pure-JAX reference (same semantics as torch.nn.LSTM + head), for verification
# ---------------------------------------------------------------------------
def reference_forward(x, raw):
    (w_ih0, w_hh0, b_ih0, b_hh0,
     w_ih1, w_hh1, b_ih1, b_hh1,
     w_lin, b_lin) = raw
    B, T = x.shape[0], x.shape[1]
    xs = x.reshape(B, T, -1).astype(jnp.float32)

    def cell(x_t, h_prev, c_prev, w_ih, w_hh, b_ih, b_hh):
        g = x_t @ w_ih.T + h_prev @ w_hh.T + b_ih + b_hh
        i = jax.nn.sigmoid(g[:, :H])
        f = jax.nn.sigmoid(g[:, H:2 * H])
        gg = jnp.tanh(g[:, 2 * H:3 * H])
        o = jax.nn.sigmoid(g[:, 3 * H:])
        c = f * c_prev + i * gg
        return o * jnp.tanh(c), c

    h0 = c0 = h1 = c1 = jnp.zeros((B, H), jnp.float32)
    for t in range(T):
        h0, c0 = cell(xs[:, t, :], h0, c0, w_ih0, w_hh0, b_ih0, b_hh0)
        h1, c1 = cell(h0, h1, c1, w_ih1, w_hh1, b_ih1, b_hh1)
    return jnp.maximum(h1, 0.0) @ w_lin.T + b_lin


if __name__ == "__main__":
    key = jax.random.PRNGKey(0)
    k_param, k_x = jax.random.split(key)

    B, T = 2, 8
    x = jax.random.normal(k_x, (B, T, DIM_D, DIM_F), jnp.float32)

    raw = init_raw_params(k_param)
    kparams = prepare_kernel_params(raw)

    out = stock_predictor_forward(x, kparams)
    out = jax.block_until_ready(out)

    ref = reference_forward(x, raw)
    assert out.shape == (B, DIM_D)
    assert jnp.allclose(out, ref, atol=1e-5, rtol=1e-5), "mismatch vs reference"

    print("KERNEL_OK")
</pallas_src>

<mosaic_0001>
module attributes {stable_mosaic.version = 11 : i64} {
  func.func @stock_predictor_kernel(%arg0: i32, %arg1: memref<2x8x5xf32, #tpu.memory_space<vmem>>, %arg2: memref<5x32xf32, #tpu.memory_space<vmem>>, %arg3: memref<8x32xf32, #tpu.memory_space<vmem>>, %arg4: memref<1x32xf32, #tpu.memory_space<vmem>>, %arg5: memref<16x32xf32, #tpu.memory_space<vmem>>, %arg6: memref<1x32xf32, #tpu.memory_space<vmem>>, %arg7: memref<8x5xf32, #tpu.memory_space<vmem>>, %arg8: memref<1x5xf32, #tpu.memory_space<vmem>>, %arg9: memref<2x5xf32, #tpu.memory_space<vmem>>) attributes {dimension_semantics = [#tpu.dimension_semantics<arbitrary>], iteration_bounds = array<i64: 1>, scalar_prefetch = 0 : i64, scratch_operands = 0 : i64, tpu.core_type = #tpu.core_type<tc>, window_params = [{pipeline_mode = #tpu.pipeline_mode<synchronous>, transform_indices = @transform_0, window_bounds = array<i64: 2, 8, 5>}, {pipeline_mode = #tpu.pipeline_mode<synchronous>, transform_indices = @transform_1, window_bounds = array<i64: 5, 32>}, {pipeline_mode = #tpu.pipeline_mode<synchronous>, transform_indices = @transform_2, window_bounds = array<i64: 8, 32>}, {pipeline_mode = #tpu.pipeline_mode<synchronous>, transform_indices = @transform_3, window_bounds = array<i64: 1, 32>}, {pipeline_mode = #tpu.pipeline_mode<synchronous>, transform_indices = @transform_4, window_bounds = array<i64: 16, 32>}, {pipeline_mode = #tpu.pipeline_mode<synchronous>, transform_indices = @transform_5, window_bounds = array<i64: 1, 32>}, {pipeline_mode = #tpu.pipeline_mode<synchronous>, transform_indices = @transform_6, window_bounds = array<i64: 8, 5>}, {pipeline_mode = #tpu.pipeline_mode<synchronous>, transform_indices = @transform_7, window_bounds = array<i64: 1, 5>}, {pipeline_mode = #tpu.pipeline_mode<synchronous>, transform_indices = @transform_8, window_bounds = array<i64: 2, 5>}]} {
    %c0 = arith.constant 0 : index
    %c0_0 = arith.constant 0 : index
    %0 = vector.load %arg3[%c0, %c0_0] : memref<8x32xf32, #tpu.memory_space<vmem>>, vector<8x32xf32>
    %c0_1 = arith.constant 0 : index
    %c0_2 = arith.constant 0 : index
    %1 = vector.load %arg5[%c0_1, %c0_2] : memref<16x32xf32, #tpu.memory_space<vmem>>, vector<16x32xf32>
    %c0_3 = arith.constant 0 : index
    %c0_4 = arith.constant 0 : index
    %2 = vector.load %arg6[%c0_3, %c0_4] : memref<1x32xf32, #tpu.memory_space<vmem>>, vector<1x32xf32>
    %3 = vector.shape_cast %2 : vector<1x32xf32> to vector<1x32xf32>
    %4 = vector.broadcast %3 : vector<1x32xf32> to vector<2x32xf32>
    %c0_5 = arith.constant 0 : index
    %c0_6 = arith.constant 0 : index
    %c0_7 = arith.constant 0 : index
    %5 = vector.load %arg1[%c0_5, %c0_6, %c0_7] : memref<2x8x5xf32, #tpu.memory_space<vmem>>, vector<2x8x5xf32>
    %6 = vector.shape_cast %5 : vector<2x8x5xf32> to vector<16x5xf32>
    %c0_8 = arith.constant 0 : index
    %c0_9 = arith.constant 0 : index
    %7 = vector.load %arg2[%c0_8, %c0_9] : memref<5x32xf32, #tpu.memory_space<vmem>>, vector<5x32xf32>
    %cst = arith.constant dense<0.000000e+00> : vector<16x32xf32>
    %8 = tpu.matmul %6, %7, %cst {dimension_numbers = #tpu.dot_dimension_numbers<[1], [0], [0], [1], [0, 0, 1, 1], [], []>} : vector<16x5xf32>, vector<5x32xf32>, vector<16x32xf32> -> vector<16x32xf32>
    %c0_10 = arith.constant 0 : index
    %c0_11 = arith.constant 0 : index
    %9 = vector.load %arg4[%c0_10, %c0_11] : memref<1x32xf32, #tpu.memory_space<vmem>>, vector<1x32xf32>
    %10 = vector.broadcast %9 : vector<1x32xf32> to vector<16x32xf32>
    %11 = arith.addf %8, %10 : vector<16x32xf32>
    %12 = vector.shape_cast %11 : vector<16x32xf32> to vector<2x8x32xf32>
    %cst_12 = arith.constant 0.000000e+00 : f32
    %13 = vector.broadcast %cst_12 : f32 to vector<2x8xf32>
    %14 = vector.extract_strided_slice %12 {offsets = [0, 0, 0], sizes = [2, 1, 32], strides = [1, 1, 1]} : vector<2x8x32xf32> to vector<2x1x32xf32>
    %15 = vector.shape_cast %14 : vector<2x1x32xf32> to vector<2x32xf32>
    %cst_13 = arith.constant dense<0.000000e+00> : vector<2x32xf32>
    %16 = tpu.matmul %13, %0, %cst_13 {dimension_numbers = #tpu.dot_dimension_numbers<[1], [0], [0], [1], [0, 0, 1, 1], [], []>} : vector<2x8xf32>, vector<8x32xf32>, vector<2x32xf32> -> vector<2x32xf32>
    %17 = arith.addf %15, %16 : vector<2x32xf32>
    %18 = math.tanh %17 : vector<2x32xf32>
    %19 = vector.extract_strided_slice %18 {offsets = [0, 0], sizes = [2, 24], strides = [1, 1]} : vector<2x32xf32> to vector<2x24xf32>
    %cst_14 = arith.constant 5.000000e-01 : f32
    %20 = vector.broadcast %cst_14 : f32 to vector<2x24xf32>
    %21 = arith.mulf %20, %19 : vector<2x24xf32>
    %cst_15 = arith.constant 5.000000e-01 : f32
    %22 = vector.broadcast %cst_15 : f32 to vector<2x24xf32>
    %23 = arith.addf %21, %22 : vector<2x24xf32>
    %24 = vector.extract_strided_slice %23 {offsets = [0, 0], sizes = [2, 8], strides = [1, 1]} : vector<2x24xf32> to vector<2x8xf32>
    %25 = vector.extract_strided_slice %23 {offsets = [0, 8], sizes = [2, 8], strides = [1, 1]} : vector<2x24xf32> to vector<2x8xf32>
    %26 = vector.extract_strided_slice %23 {offsets = [0, 16], sizes = [2, 8], strides = [1, 1]} : vector<2x24xf32> to vector<2x8xf32>
    %27 = vector.extract_strided_slice %18 {offsets = [0, 24], sizes = [2, 8], strides = [1, 1]} : vector<2x32xf32> to vector<2x8xf32>
    %28 = arith.mulf %25, %13 : vector<2x8xf32>
    %29 = arith.mulf %24, %27 : vector<2x8xf32>
    %30 = arith.addf %28, %29 : vector<2x8xf32>
    %31 = math.tanh %30 : vector<2x8xf32>
    %32 = arith.mulf %26, %31 : vector<2x8xf32>
    %33 = tpu.concatenate %32, %13 in 1 : vector<2x8xf32>, vector<2x8xf32> -> vector<2x16xf32>
    %cst_16 = arith.constant dense<0.000000e+00> : vector<2x32xf32>
    %34 = tpu.matmul %33, %1, %cst_16 {dimension_numbers = #tpu.dot_dimension_numbers<[1], [0], [0], [1], [0, 0, 1, 1], [], []>} : vector<2x16xf32>, vector<16x32xf32>, vector<2x32xf32> -> vector<2x32xf32>
    %35 = arith.addf %34, %4 : vector<2x32xf32>
    %36 = math.tanh %35 : vector<2x32xf32>
    %37 = vector.extract_strided_slice %36 {offsets = [0, 0], sizes = [2, 24], strides = [1, 1]} : vector<2x32xf32> to vector<2x24xf32>
    %cst_17 = arith.constant 5.000000e-01 : f32
    %38 = vector.broadcast %cst_17 : f32 to vector<2x24xf32>
    %39 = arith.mulf %38, %37 : vector<2x24xf32>
    %cst_18 = arith.constant 5.000000e-01 : f32
    %40 = vector.broadcast %cst_18 : f32 to vector<2x24xf32>
    %41 = arith.addf %39, %40 : vector<2x24xf32>
    %42 = vector.extract_strided_slice %41 {offsets = [0, 0], sizes = [2, 8], strides = [1, 1]} : vector<2x24xf32> to vector<2x8xf32>
    %43 = vector.extract_strided_slice %41 {offsets = [0, 8], sizes = [2, 8], strides = [1, 1]} : vector<2x24xf32> to vector<2x8xf32>
    %44 = vector.extract_strided_slice %41 {offsets = [0, 16], sizes = [2, 8], strides = [1, 1]} : vector<2x24xf32> to vector<2x8xf32>
    %45 = vector.extract_strided_slice %36 {offsets = [0, 24], sizes = [2, 8], strides = [1, 1]} : vector<2x32xf32> to vector<2x8xf32>
    %46 = arith.mulf %43, %13 : vector<2x8xf32>
    %47 = arith.mulf %42, %45 : vector<2x8xf32>
    %48 = arith.addf %46, %47 : vector<2x8xf32>
    %49 = math.tanh %48 : vector<2x8xf32>
    %50 = arith.mulf %44, %49 : vector<2x8xf32>
    %51 = vector.extract_strided_slice %12 {offsets = [0, 1, 0], sizes = [2, 1, 32], strides = [1, 1, 1]} : vector<2x8x32xf32> to vector<2x1x32xf32>
    %52 = vector.shape_cast %51 : vector<2x1x32xf32> to vector<2x32xf32>
    %cst_19 = arith.constant dense<0.000000e+00> : vector<2x32xf32>
    %53 = tpu.matmul %32, %0, %cst_19 {dimension_numbers = #tpu.dot_dimension_numbers<[1], [0], [0], [1], [0, 0, 1, 1], [], []>} : vector<2x8xf32>, vector<8x32xf32>, vector<2x32xf32> -> vector<2x32xf32>
    %54 = arith.addf %52, %53 : vector<2x32xf32>
    %55 = math.tanh %54 : vector<2x32xf32>
    %56 = vector.extract_strided_slice %55 {offsets = [0, 0], sizes = [2, 24], strides = [1, 1]} : vector<2x32xf32> to vector<2x24xf32>
    %cst_20 = arith.constant 5.000000e-01 : f32
    %57 = vector.broadcast %cst_20 : f32 to vector<2x24xf32>
    %58 = arith.mulf %57, %56 : vector<2x24xf32>
    %cst_21 = arith.constant 5.000000e-01 : f32
    %59 = vector.broadcast %cst_21 : f32 to vector<2x24xf32>
    %60 = arith.addf %58, %59 : vector<2x24xf32>
    %61 = vector.extract_strided_slice %60 {offsets = [0, 0], sizes = [2, 8], strides = [1, 1]} : vector<2x24xf32> to vector<2x8xf32>
    %62 = vector.extract_strided_slice %60 {offsets = [0, 8], sizes = [2, 8], strides = [1, 1]} : vector<2x24xf32> to vector<2x8xf32>
    %63 = vector.extract_strided_slice %60 {offsets = [0, 16], sizes = [2, 8], strides = [1, 1]} : vector<2x24xf32> to vector<2x8xf32>
    %64 = vector.extract_strided_slice %55 {offsets = [0, 24], sizes = [2, 8], strides = [1, 1]} : vector<2x32xf32> to vector<2x8xf32>
    %65 = arith.mulf %62, %30 : vector<2x8xf32>
    %66 = arith.mulf %61, %64 : vector<2x8xf32>
    %67 = arith.addf %65, %66 : vector<2x8xf32>
    %68 = math.tanh %67 : vector<2x8xf32>
    %69 = arith.mulf %63, %68 : vector<2x8xf32>
    %70 = tpu.concatenate %69, %50 in 1 : vector<2x8xf32>, vector<2x8xf32> -> vector<2x16xf32>
    %cst_22 = arith.constant dense<0.000000e+00> : vector<2x32xf32>
    %71 = tpu.matmul %70, %1, %cst_22 {dimension_numbers = #tpu.dot_dimension_numbers<[1], [0], [0], [1], [0, 0, 1, 1], [], []>} : vector<2x16xf32>, vector<16x32xf32>, vector<2x32xf32> -> vector<2x32xf32>
    %72 = arith.addf %71, %4 : vector<2x32xf32>
    %73 = math.tanh %72 : vector<2x32xf32>
    %74 = vector.extract_strided_slice %73 {offsets = [0, 0], sizes = [2, 24], strides = [1, 1]} : vector<2x32xf32> to vector<2x24xf32>
    %cst_23 = arith.constant 5.000000e-01 : f32
    %75 = vector.broadcast %cst_23 : f32 to vector<2x24xf32>
    %76 = arith.mulf %75, %74 : vector<2x24xf32>
    %cst_24 = arith.constant 5.000000e-01 : f32
    %77 = vector.broadcast %cst_24 : f32 to vector<2x24xf32>
    %78 = arith.addf %76, %77 : vector<2x24xf32>
    %79 = vector.extract_strided_slice %78 {offsets = [0, 0], sizes = [2, 8], strides = [1, 1]} : vector<2x24xf32> to vector<2x8xf32>
    %80 = vector.extract_strided_slice %78 {offsets = [0, 8], sizes = [2, 8], strides = [1, 1]} : vector<2x24xf32> to vector<2x8xf32>
    %81 = vector.extract_strided_slice %78 {offsets = [0, 16], sizes = [2, 8], strides = [1, 1]} : vector<2x24xf32> to vector<2x8xf32>
    %82 = vector.extract_strided_slice %73 {offsets = [0, 24], sizes = [2, 8], strides = [1, 1]} : vector<2x32xf32> to vector<2x8xf32>
    %83 = arith.mulf %80, %48 : vector<2x8xf32>
    %84 = arith.mulf %79, %82 : vector<2x8xf32>
    %85 = arith.addf %83, %84 : vector<2x8xf32>
    %86 = math.tanh %85 : vector<2x8xf32>
    %87 = arith.mulf %81, %86 : vector<2x8xf32>
    %88 = vector.extract_strided_slice %12 {offsets = [0, 2, 0], sizes = [2, 1, 32], strides = [1, 1, 1]} : vector<2x8x32xf32> to vector<2x1x32xf32>
    %89 = vector.shape_cast %88 : vector<2x1x32xf32> to vector<2x32xf32>
    %cst_25 = arith.constant dense<0.000000e+00> : vector<2x32xf32>
    %90 = tpu.matmul %69, %0, %cst_25 {dimension_numbers = #tpu.dot_dimension_numbers<[1], [0], [0], [1], [0, 0, 1, 1], [], []>} : vector<2x8xf32>, vector<8x32xf32>, vector<2x32xf32> -> vector<2x32xf32>
    %91 = arith.addf %89, %90 : vector<2x32xf32>
    %92 = math.tanh %91 : vector<2x32xf32>
    %93 = vector.extract_strided_slice %92 {offsets = [0, 0], sizes = [2, 24], strides = [1, 1]} : vector<2x32xf32> to vector<2x24xf32>
    %cst_26 = arith.constant 5.000000e-01 : f32
    %94 = vector.broadcast %cst_26 : f32 to vector<2x24xf32>
    %95 = arith.mulf %94, %93 : vector<2x24xf32>
    %cst_27 = arith.constant 5.000000e-01 : f32
    %96 = vector.broadcast %cst_27 : f32 to vector<2x24xf32>
    %97 = arith.addf %95, %96 : vector<2x24xf32>
    %98 = vector.extract_strided_slice %97 {offsets = [0, 0], sizes = [2, 8], strides = [1, 1]} : vector<2x24xf32> to vector<2x8xf32>
    %99 = vector.extract_strided_slice %97 {offsets = [0, 8], sizes = [2, 8], strides = [1, 1]} : vector<2x24xf32> to vector<2x8xf32>
    %100 = vector.extract_strided_slice %97 {offsets = [0, 16], sizes = [2, 8], strides = [1, 1]} : vector<2x24xf32> to vector<2x8xf32>
    %101 = vector.extract_strided_slice %92 {offsets = [0, 24], sizes = [2, 8], strides = [1, 1]} : vector<2x32xf32> to vector<2x8xf32>
    %102 = arith.mulf %99, %67 : vector<2x8xf32>
    %103 = arith.mulf %98, %101 : vector<2x8xf32>
    %104 = arith.addf %102, %103 : vector<2x8xf32>
    %105 = math.tanh %104 : vector<2x8xf32>
    %106 = arith.mulf %100, %105 : vector<2x8xf32>
    %107 = tpu.concatenate %106, %87 in 1 : vector<2x8xf32>, vector<2x8xf32> -> vector<2x16xf32>
    %cst_28 = arith.constant dense<0.000000e+00> : vector<2x32xf32>
    %108 = tpu.matmul %107, %1, %cst_28 {dimension_numbers = #tpu.dot_dimension_numbers<[1], [0], [0], [1], [0, 0, 1, 1], [], []>} : vector<2x16xf32>, vector<16x32xf32>, vector<2x32xf32> -> vector<2x32xf32>
    %109 = arith.addf %108, %4 : vector<2x32xf32>
    %110 = math.tanh %109 : vector<2x32xf32>
    %111 = vector.extract_strided_slice %110 {offsets = [0, 0], sizes = [2, 24], strides = [1, 1]} : vector<2x32xf32> to vector<2x24xf32>
    %cst_29 = arith.constant 5.000000e-01 : f32
    %112 = vector.broadcast %cst_29 : f32 to vector<2x24xf32>
    %113 = arith.mulf %112, %111 : vector<2x24xf32>
    %cst_30 = arith.constant 5.000000e-01 : f32
    %114 = vector.broadcast %cst_30 : f32 to vector<2x24xf32>
    %115 = arith.addf %113, %114 : vector<2x24xf32>
    %116 = vector.extract_strided_slice %115 {offsets = [0, 0], sizes = [2, 8], strides = [1, 1]} : vector<2x24xf32> to vector<2x8xf32>
    %117 = vector.extract_strided_slice %115 {offsets = [0, 8], sizes = [2, 8], strides = [1, 1]} : vector<2x24xf32> to vector<2x8xf32>
    %118 = vector.extract_strided_slice %115 {offsets = [0, 16], sizes = [2, 8], strides = [1, 1]} : vector<2x24xf32> to vector<2x8xf32>
    %119 = vector.extract_strided_slice %110 {offsets = [0, 24], sizes = [2, 8], strides = [1, 1]} : vector<2x32xf32> to vector<2x8xf32>
    %120 = arith.mulf %117, %85 : vector<2x8xf32>
    %121 = arith.mulf %116, %119 : vector<2x8xf32>
    %122 = arith.addf %120, %121 : vector<2x8xf32>
    %123 = math.tanh %122 : vector<2x8xf32>
    %124 = arith.mulf %118, %123 : vector<2x8xf32>
    %125 = vector.extract_strided_slice %12 {offsets = [0, 3, 0], sizes = [2, 1, 32], strides = [1, 1, 1]} : vector<2x8x32xf32> to vector<2x1x32xf32>
    %126 = vector.shape_cast %125 : vector<2x1x32xf32> to vector<2x32xf32>
    %cst_31 = arith.constant dense<0.000000e+00> : vector<2x32xf32>
    %127 = tpu.matmul %106, %0, %cst_31 {dimension_numbers = #tpu.dot_dimension_numbers<[1], [0], [0], [1], [0, 0, 1, 1], [], []>} : vector<2x8xf32>, vector<8x32xf32>, vector<2x32xf32> -> vector<2x32xf32>
    %128 = arith.addf %126, %127 : vector<2x32xf32>
    %129 = math.tanh %128 : vector<2x32xf32>
    %130 = vector.extract_strided_slice %129 {offsets = [0, 0], sizes = [2, 24], strides = [1, 1]} : vector<2x32xf32> to vector<2x24xf32>
    %cst_32 = arith.constant 5.000000e-01 : f32
    %131 = vector.broadcast %cst_32 : f32 to vector<2x24xf32>
    %132 = arith.mulf %131, %130 : vector<2x24xf32>
    %cst_33 = arith.constant 5.000000e-01 : f32
    %133 = vector.broadcast %cst_33 : f32 to vector<2x24xf32>
    %134 = arith.addf %132, %133 : vector<2x24xf32>
    %135 = vector.extract_strided_slice %134 {offsets = [0, 0], sizes = [2, 8], strides = [1, 1]} : vector<2x24xf32> to vector<2x8xf32>
    %136 = vector.extract_strided_slice %134 {offsets = [0, 8], sizes = [2, 8], strides = [1, 1]} : vector<2x24xf32> to vector<2x8xf32>
    %137 = vector.extract_strided_slice %134 {offsets = [0, 16], sizes = [2, 8], strides = [1, 1]} : vector<2x24xf32> to vector<2x8xf32>
    %138 = vector.extract_strided_slice %129 {offsets = [0, 24], sizes = [2, 8], strides = [1, 1]} : vector<2x32xf32> to vector<2x8xf32>
    %139 = arith.mulf %136, %104 : vector<2x8xf32>
    %140 = arith.mulf %135, %138 : vector<2x8xf32>
    %141 = arith.addf %139, %140 : vector<2x8xf32>
    %142 = math.tanh %141 : vector<2x8xf32>
    %143 = arith.mulf %137, %142 : vector<2x8xf32>
    %144 = tpu.concatenate %143, %124 in 1 : vector<2x8xf32>, vector<2x8xf32> -> vector<2x16xf32>
    %cst_34 = arith.constant dense<0.000000e+00> : vector<2x32xf32>
    %145 = tpu.matmul %144, %1, %cst_34 {dimension_numbers = #tpu.dot_dimension_numbers<[1], [0], [0], [1], [0, 0, 1, 1], [], []>} : vector<2x16xf32>, vector<16x32xf32>, vector<2x32xf32> -> vector<2x32xf32>
    %146 = arith.addf %145, %4 : vector<2x32xf32>
    %147 = math.tanh %146 : vector<2x32xf32>
    %148 = vector.extract_strided_slice %147 {offsets = [0, 0], sizes = [2, 24], strides = [1, 1]} : vector<2x32xf32> to vector<2x24xf32>
    %cst_35 = arith.constant 5.000000e-01 : f32
    %149 = vector.broadcast %cst_35 : f32 to vector<2x24xf32>
    %150 = arith.mulf %149, %148 : vector<2x24xf32>
    %cst_36 = arith.constant 5.000000e-01 : f32
    %151 = vector.broadcast %cst_36 : f32 to vector<2x24xf32>
    %152 = arith.addf %150, %151 : vector<2x24xf32>
    %153 = vector.extract_strided_slice %152 {offsets = [0, 0], sizes = [2, 8], strides = [1, 1]} : vector<2x24xf32> to vector<2x8xf32>
    %154 = vector.extract_strided_slice %152 {offsets = [0, 8], sizes = [2, 8], strides = [1, 1]} : vector<2x24xf32> to vector<2x8xf32>
    %155 = vector.extract_strided_slice %152 {offsets = [0, 16], sizes = [2, 8], strides = [1, 1]} : vector<2x24xf32> to vector<2x8xf32>
    %156 = vector.extract_strided_slice %147 {offsets = [0, 24], sizes = [2, 8], strides = [1, 1]} : vector<2x32xf32> to vector<2x8xf32>
    %157 = arith.mulf %154, %122 : vector<2x8xf32>
    %158 = arith.mulf %153, %156 : vector<2x8xf32>
    %159 = arith.addf %157, %158 : vector<2x8xf32>
    %160 = math.tanh %159 : vector<2x8xf32>
    %161 = arith.mulf %155, %160 : vector<2x8xf32>
    %162 = vector.extract_strided_slice %12 {offsets = [0, 4, 0], sizes = [2, 1, 32], strides = [1, 1, 1]} : vector<2x8x32xf32> to vector<2x1x32xf32>
    %163 = vector.shape_cast %162 : vector<2x1x32xf32> to vector<2x32xf32>
    %cst_37 = arith.constant dense<0.000000e+00> : vector<2x32xf32>
    %164 = tpu.matmul %143, %0, %cst_37 {dimension_numbers = #tpu.dot_dimension_numbers<[1], [0], [0], [1], [0, 0, 1, 1], [], []>} : vector<2x8xf32>, vector<8x32xf32>, vector<2x32xf32> -> vector<2x32xf32>
    %165 = arith.addf %163, %164 : vector<2x32xf32>
    %166 = math.tanh %165 : vector<2x32xf32>
    %167 = vector.extract_strided_slice %166 {offsets = [0, 0], sizes = [2, 24], strides = [1, 1]} : vector<2x32xf32> to vector<2x24xf32>
    %cst_38 = arith.constant 5.000000e-01 : f32
    %168 = vector.broadcast %cst_38 : f32 to vector<2x24xf32>
    %169 = arith.mulf %168, %167 : vector<2x24xf32>
    %cst_39 = arith.constant 5.000000e-01 : f32
    %170 = vector.broadcast %cst_39 : f32 to vector<2x24xf32>
    %171 = arith.addf %169, %170 : vector<2x24xf32>
    %172 = vector.extract_strided_slice %171 {offsets = [0, 0], sizes = [2, 8], strides = [1, 1]} : vector<2x24xf32> to vector<2x8xf32>
    %173 = vector.extract_strided_slice %171 {offsets = [0, 8], sizes = [2, 8], strides = [1, 1]} : vector<2x24xf32> to vector<2x8xf32>
    %174 = vector.extract_strided_slice %171 {offsets = [0, 16], sizes = [2, 8], strides = [1, 1]} : vector<2x24xf32> to vector<2x8xf32>
    %175 = vector.extract_strided_slice %166 {offsets = [0, 24], sizes = [2, 8], strides = [1, 1]} : vector<2x32xf32> to vector<2x8xf32>
    %176 = arith.mulf %173, %141 : vector<2x8xf32>
    %177 = arith.mulf %172, %175 : vector<2x8xf32>
    %178 = arith.addf %176, %177 : vector<2x8xf32>
    %179 = math.tanh %178 : vector<2x8xf32>
    %180 = arith.mulf %174, %179 : vector<2x8xf32>
    %181 = tpu.concatenate %180, %161 in 1 : vector<2x8xf32>, vector<2x8xf32> -> vector<2x16xf32>
    %cst_40 = arith.constant dense<0.000000e+00> : vector<2x32xf32>
    %182 = tpu.matmul %181, %1, %cst_40 {dimension_numbers = #tpu.dot_dimension_numbers<[1], [0], [0], [1], [0, 0, 1, 1], [], []>} : vector<2x16xf32>, vector<16x32xf32>, vector<2x32xf32> -> vector<2x32xf32>
    %183 = arith.addf %182, %4 : vector<2x32xf32>
    %184 = math.tanh %183 : vector<2x32xf32>
    %185 = vector.extract_strided_slice %184 {offsets = [0, 0], sizes = [2, 24], strides = [1, 1]} : vector<2x32xf32> to vector<2x24xf32>
    %cst_41 = arith.constant 5.000000e-01 : f32
    %186 = vector.broadcast %cst_41 : f32 to vector<2x24xf32>
    %187 = arith.mulf %186, %185 : vector<2x24xf32>
    %cst_42 = arith.constant 5.000000e-01 : f32
    %188 = vector.broadcast %cst_42 : f32 to vector<2x24xf32>
    %189 = arith.addf %187, %188 : vector<2x24xf32>
    %190 = vector.extract_strided_slice %189 {offsets = [0, 0], sizes = [2, 8], strides = [1, 1]} : vector<2x24xf32> to vector<2x8xf32>
    %191 = vector.extract_strided_slice %189 {offsets = [0, 8], sizes = [2, 8], strides = [1, 1]} : vector<2x24xf32> to vector<2x8xf32>
    %192 = vector.extract_strided_slice %189 {offsets = [0, 16], sizes = [2, 8], strides = [1, 1]} : vector<2x24xf32> to vector<2x8xf32>
    %193 = vector.extract_strided_slice %184 {offsets = [0, 24], sizes = [2, 8], strides = [1, 1]} : vector<2x32xf32> to vector<2x8xf32>
    %194 = arith.mulf %191, %159 : vector<2x8xf32>
    %195 = arith.mulf %190, %193 : vector<2x8xf32>
    %196 = arith.addf %194, %195 : vector<2x8xf32>
    %197 = math.tanh %196 : vector<2x8xf32>
    %198 = arith.mulf %192, %197 : vector<2x8xf32>
    %199 = vector.extract_strided_slice %12 {offsets = [0, 5, 0], sizes = [2, 1, 32], strides = [1, 1, 1]} : vector<2x8x32xf32> to vector<2x1x32xf32>
    %200 = vector.shape_cast %199 : vector<2x1x32xf32> to vector<2x32xf32>
    %cst_43 = arith.constant dense<0.000000e+00> : vector<2x32xf32>
    %201 = tpu.matmul %180, %0, %cst_43 {dimension_numbers = #tpu.dot_dimension_numbers<[1], [0], [0], [1], [0, 0, 1, 1], [], []>} : vector<2x8xf32>, vector<8x32xf32>, vector<2x32xf32> -> vector<2x32xf32>
    %202 = arith.addf %200, %201 : vector<2x32xf32>
    %203 = math.tanh %202 : vector<2x32xf32>
    %204 = vector.extract_strided_slice %203 {offsets = [0, 0], sizes = [2, 24], strides = [1, 1]} : vector<2x32xf32> to vector<2x24xf32>
    %cst_44 = arith.constant 5.000000e-01 : f32
    %205 = vector.broadcast %cst_44 : f32 to vector<2x24xf32>
    %206 = arith.mulf %205, %204 : vector<2x24xf32>
    %cst_45 = arith.constant 5.000000e-01 : f32
    %207 = vector.broadcast %cst_45 : f32 to vector<2x24xf32>
    %208 = arith.addf %206, %207 : vector<2x24xf32>
    %209 = vector.extract_strided_slice %208 {offsets = [0, 0], sizes = [2, 8], strides = [1, 1]} : vector<2x24xf32> to vector<2x8xf32>
    %210 = vector.extract_strided_slice %208 {offsets = [0, 8], sizes = [2, 8], strides = [1, 1]} : vector<2x24xf32> to vector<2x8xf32>
    %211 = vector.extract_strided_slice %208 {offsets = [0, 16], sizes = [2, 8], strides = [1, 1]} : vector<2x24xf32> to vector<2x8xf32>
    %212 = vector.extract_strided_slice %203 {offsets = [0, 24], sizes = [2, 8], strides = [1, 1]} : vector<2x32xf32> to vector<2x8xf32>
    %213 = arith.mulf %210, %178 : vector<2x8xf32>
    %214 = arith.mulf %209, %212 : vector<2x8xf32>
    %215 = arith.addf %213, %214 : vector<2x8xf32>
    %216 = math.tanh %215 : vector<2x8xf32>
    %217 = arith.mulf %211, %216 : vector<2x8xf32>
    %218 = tpu.concatenate %217, %198 in 1 : vector<2x8xf32>, vector<2x8xf32> -> vector<2x16xf32>
    %cst_46 = arith.constant dense<0.000000e+00> : vector<2x32xf32>
    %219 = tpu.matmul %218, %1, %cst_46 {dimension_numbers = #tpu.dot_dimension_numbers<[1], [0], [0], [1], [0, 0, 1, 1], [], []>} : vector<2x16xf32>, vector<16x32xf32>, vector<2x32xf32> -> vector<2x32xf32>
    %220 = arith.addf %219, %4 : vector<2x32xf32>
    %221 = math.tanh %220 : vector<2x32xf32>
    %222 = vector.extract_strided_slice %221 {offsets = [0, 0], sizes = [2, 24], strides = [1, 1]} : vector<2x32xf32> to vector<2x24xf32>
    %cst_47 = arith.constant 5.000000e-01 : f32
    %223 = vector.broadcast %cst_47 : f32 to vector<2x24xf32>
    %224 = arith.mulf %223, %222 : vector<2x24xf32>
    %cst_48 = arith.constant 5.000000e-01 : f32
    %225 = vector.broadcast %cst_48 : f32 to vector<2x24xf32>
    %226 = arith.addf %224, %225 : vector<2x24xf32>
    %227 = vector.extract_strided_slice %226 {offsets = [0, 0], sizes = [2, 8], strides = [1, 1]} : vector<2x24xf32> to vector<2x8xf32>
    %228 = vector.extract_strided_slice %226 {offsets = [0, 8], sizes = [2, 8], strides = [1, 1]} : vector<2x24xf32> to vector<2x8xf32>
    %229 = vector.extract_strided_slice %226 {offsets = [0, 16], sizes = [2, 8], strides = [1, 1]} : vector<2x24xf32> to vector<2x8xf32>
    %230 = vector.extract_strided_slice %221 {offsets = [0, 24], sizes = [2, 8], strides = [1, 1]} : vector<2x32xf32> to vector<2x8xf32>
    %231 = arith.mulf %228, %196 : vector<2x8xf32>
    %232 = arith.mulf %227, %230 : vector<2x8xf32>
    %233 = arith.addf %231, %232 : vector<2x8xf32>
    %234 = math.tanh %233 : vector<2x8xf32>
    %235 = arith.mulf %229, %234 : vector<2x8xf32>
    %236 = vector.extract_strided_slice %12 {offsets = [0, 6, 0], sizes = [2, 1, 32], strides = [1, 1, 1]} : vector<2x8x32xf32> to vector<2x1x32xf32>
    %237 = vector.shape_cast %236 : vector<2x1x32xf32> to vector<2x32xf32>
    %cst_49 = arith.constant dense<0.000000e+00> : vector<2x32xf32>
    %238 = tpu.matmul %217, %0, %cst_49 {dimension_numbers = #tpu.dot_dimension_numbers<[1], [0], [0], [1], [0, 0, 1, 1], [], []>} : vector<2x8xf32>, vector<8x32xf32>, vector<2x32xf32> -> vector<2x32xf32>
    %239 = arith.addf %237, %238 : vector<2x32xf32>
    %240 = math.tanh %239 : vector<2x32xf32>
    %241 = vector.extract_strided_slice %240 {offsets = [0, 0], sizes = [2, 24], strides = [1, 1]} : vector<2x32xf32> to vector<2x24xf32>
    %cst_50 = arith.constant 5.000000e-01 : f32
    %242 = vector.broadcast %cst_50 : f32 to vector<2x24xf32>
    %243 = arith.mulf %242, %241 : vector<2x24xf32>
    %cst_51 = arith.constant 5.000000e-01 : f32
    %244 = vector.broadcast %cst_51 : f32 to vector<2x24xf32>
    %245 = arith.addf %243, %244 : vector<2x24xf32>
    %246 = vector.extract_strided_slice %245 {offsets = [0, 0], sizes = [2, 8], strides = [1, 1]} : vector<2x24xf32> to vector<2x8xf32>
    %247 = vector.extract_strided_slice %245 {offsets = [0, 8], sizes = [2, 8], strides = [1, 1]} : vector<2x24xf32> to vector<2x8xf32>
    %248 = vector.extract_strided_slice %245 {offsets = [0, 16], sizes = [2, 8], strides = [1, 1]} : vector<2x24xf32> to vector<2x8xf32>
    %249 = vector.extract_strided_slice %240 {offsets = [0, 24], sizes = [2, 8], strides = [1, 1]} : vector<2x32xf32> to vector<2x8xf32>
    %250 = arith.mulf %247, %215 : vector<2x8xf32>
    %251 = arith.mulf %246, %249 : vector<2x8xf32>
    %252 = arith.addf %250, %251 : vector<2x8xf32>
    %253 = math.tanh %252 : vector<2x8xf32>
    %254 = arith.mulf %248, %253 : vector<2x8xf32>
    %255 = tpu.concatenate %254, %235 in 1 : vector<2x8xf32>, vector<2x8xf32> -> vector<2x16xf32>
    %cst_52 = arith.constant dense<0.000000e+00> : vector<2x32xf32>
    %256 = tpu.matmul %255, %1, %cst_52 {dimension_numbers = #tpu.dot_dimension_numbers<[1], [0], [0], [1], [0, 0, 1, 1], [], []>} : vector<2x16xf32>, vector<16x32xf32>, vector<2x32xf32> -> vector<2x32xf32>
    %257 = arith.addf %256, %4 : vector<2x32xf32>
    %258 = math.tanh %257 : vector<2x32xf32>
    %259 = vector.extract_strided_slice %258 {offsets = [0, 0], sizes = [2, 24], strides = [1, 1]} : vector<2x32xf32> to vector<2x24xf32>
    %cst_53 = arith.constant 5.000000e-01 : f32
    %260 = vector.broadcast %cst_53 : f32 to vector<2x24xf32>
    %261 = arith.mulf %260, %259 : vector<2x24xf32>
    %cst_54 = arith.constant 5.000000e-01 : f32
    %262 = vector.broadcast %cst_54 : f32 to vector<2x24xf32>
    %263 = arith.addf %261, %262 : vector<2x24xf32>
    %264 = vector.extract_strided_slice %263 {offsets = [0, 0], sizes = [2, 8], strides = [1, 1]} : vector<2x24xf32> to vector<2x8xf32>
    %265 = vector.extract_strided_slice %263 {offsets = [0, 8], sizes = [2, 8], strides = [1, 1]} : vector<2x24xf32> to vector<2x8xf32>
    %266 = vector.extract_strided_slice %263 {offsets = [0, 16], sizes = [2, 8], strides = [1, 1]} : vector<2x24xf32> to vector<2x8xf32>
    %267 = vector.extract_strided_slice %258 {offsets = [0, 24], sizes = [2, 8], strides = [1, 1]} : vector<2x32xf32> to vector<2x8xf32>
    %268 = arith.mulf %265, %233 : vector<2x8xf32>
    %269 = arith.mulf %264, %267 : vector<2x8xf32>
    %270 = arith.addf %268, %269 : vector<2x8xf32>
    %271 = math.tanh %270 : vector<2x8xf32>
    %272 = arith.mulf %266, %271 : vector<2x8xf32>
    %273 = vector.extract_strided_slice %12 {offsets = [0, 7, 0], sizes = [2, 1, 32], strides = [1, 1, 1]} : vector<2x8x32xf32> to vector<2x1x32xf32>
    %274 = vector.shape_cast %273 : vector<2x1x32xf32> to vector<2x32xf32>
    %cst_55 = arith.constant dense<0.000000e+00> : vector<2x32xf32>
    %275 = tpu.matmul %254, %0, %cst_55 {dimension_numbers = #tpu.dot_dimension_numbers<[1], [0], [0], [1], [0, 0, 1, 1], [], []>} : vector<2x8xf32>, vector<8x32xf32>, vector<2x32xf32> -> vector<2x32xf32>
    %276 = arith.addf %274, %275 : vector<2x32xf32>
    %277 = math.tanh %276 : vector<2x32xf32>
    %278 = vector.extract_strided_slice %277 {offsets = [0, 0], sizes = [2, 24], strides = [1, 1]} : vector<2x32xf32> to vector<2x24xf32>
    %cst_56 = arith.constant 5.000000e-01 : f32
    %279 = vector.broadcast %cst_56 : f32 to vector<2x24xf32>
    %280 = arith.mulf %279, %278 : vector<2x24xf32>
    %cst_57 = arith.constant 5.000000e-01 : f32
    %281 = vector.broadcast %cst_57 : f32 to vector<2x24xf32>
    %282 = arith.addf %280, %281 : vector<2x24xf32>
    %283 = vector.extract_strided_slice %282 {offsets = [0, 0], sizes = [2, 8], strides = [1, 1]} : vector<2x24xf32> to vector<2x8xf32>
    %284 = vector.extract_strided_slice %282 {offsets = [0, 8], sizes = [2, 8], strides = [1, 1]} : vector<2x24xf32> to vector<2x8xf32>
    %285 = vector.extract_strided_slice %282 {offsets = [0, 16], sizes = [2, 8], strides = [1, 1]} : vector<2x24xf32> to vector<2x8xf32>
    %286 = vector.extract_strided_slice %277 {offsets = [0, 24], sizes = [2, 8], strides = [1, 1]} : vector<2x32xf32> to vector<2x8xf32>
    %287 = arith.mulf %284, %252 : vector<2x8xf32>
    %288 = arith.mulf %283, %286 : vector<2x8xf32>
    %289 = arith.addf %287, %288 : vector<2x8xf32>
    %290 = math.tanh %289 : vector<2x8xf32>
    %291 = arith.mulf %285, %290 : vector<2x8xf32>
    %292 = tpu.concatenate %291, %272 in 1 : vector<2x8xf32>, vector<2x8xf32> -> vector<2x16xf32>
    %cst_58 = arith.constant dense<0.000000e+00> : vector<2x32xf32>
    %293 = tpu.matmul %292, %1, %cst_58 {dimension_numbers = #tpu.dot_dimension_numbers<[1], [0], [0], [1], [0, 0, 1, 1], [], []>} : vector<2x16xf32>, vector<16x32xf32>, vector<2x32xf32> -> vector<2x32xf32>
    %294 = arith.addf %293, %4 : vector<2x32xf32>
    %295 = math.tanh %294 : vector<2x32xf32>
    %296 = vector.extract_strided_slice %295 {offsets = [0, 0], sizes = [2, 24], strides = [1, 1]} : vector<2x32xf32> to vector<2x24xf32>
    %cst_59 = arith.constant 5.000000e-01 : f32
    %297 = vector.broadcast %cst_59 : f32 to vector<2x24xf32>
    %298 = arith.mulf %297, %296 : vector<2x24xf32>
    %cst_60 = arith.constant 5.000000e-01 : f32
    %299 = vector.broadcast %cst_60 : f32 to vector<2x24xf32>
    %300 = arith.addf %298, %299 : vector<2x24xf32>
    %301 = vector.extract_strided_slice %300 {offsets = [0, 0], sizes = [2, 8], strides = [1, 1]} : vector<2x24xf32> to vector<2x8xf32>
    %302 = vector.extract_strided_slice %300 {offsets = [0, 8], sizes = [2, 8], strides = [1, 1]} : vector<2x24xf32> to vector<2x8xf32>
    %303 = vector.extract_strided_slice %300 {offsets = [0, 16], sizes = [2, 8], strides = [1, 1]} : vector<2x24xf32> to vector<2x8xf32>
    %304 = vector.extract_strided_slice %295 {offsets = [0, 24], sizes = [2, 8], strides = [1, 1]} : vector<2x32xf32> to vector<2x8xf32>
    %305 = arith.mulf %302, %270 : vector<2x8xf32>
    %306 = arith.mulf %301, %304 : vector<2x8xf32>
    %307 = arith.addf %305, %306 : vector<2x8xf32>
    %308 = math.tanh %307 : vector<2x8xf32>
    %309 = arith.mulf %303, %308 : vector<2x8xf32>
    %cst_61 = arith.constant 0.000000e+00 : f32
    %310 = vector.broadcast %cst_61 : f32 to vector<2x8xf32>
    %311 = arith.maximumf %309, %310 : vector<2x8xf32>
    %c0_62 = arith.constant 0 : index
    %c0_63 = arith.constant 0 : index
    %312 = vector.load %arg7[%c0_62, %c0_63] : memref<8x5xf32, #tpu.memory_space<vmem>>, vector<8x5xf32>
    %cst_64 = arith.constant dense<0.000000e+00> : vector<2x5xf32>
    %313 = tpu.matmul %311, %312, %cst_64 {dimension_numbers = #tpu.dot_dimension_numbers<[1], [0], [0], [1], [0, 0, 1, 1], [], []>} : vector<2x8xf32>, vector<8x5xf32>, vector<2x5xf32> -> vector<2x5xf32>
    %c0_65 = arith.constant 0 : index
    %c0_66 = arith.constant 0 : index
    %314 = vector.load %arg8[%c0_65, %c0_66] : memref<1x5xf32, #tpu.memory_space<vmem>>, vector<1x5xf32>
    %315 = vector.broadcast %314 : vector<1x5xf32> to vector<2x5xf32>
    %316 = arith.addf %313, %315 : vector<2x5xf32>
    %c0_67 = arith.constant 0 : index
    %c0_68 = arith.constant 0 : index
    %317 = vector.load %arg9[%c0_67, %c0_68] : memref<2x5xf32, #tpu.memory_space<vmem>>, vector<2x5xf32>
    tpu.vector_store %arg9[%c0_67, %c0_68], %316 {strides = array<i32>} : memref<2x5xf32, #tpu.memory_space<vmem>>, vector<2x5xf32>,
    return
  }
  func.func @transform_0(%arg0: i32) -> (i32, i32, i32) {
    %c0_i32 = arith.constant 0 : i32
    %c0_i32_0 = arith.constant 0 : i32
    %c0_i32_1 = arith.constant 0 : i32
    %c0_i32_2 = arith.constant 0 : i32
    return %c0_i32, %c0_i32_0, %c0_i32_1 : i32, i32, i32
  }
  func.func @transform_1(%arg0: i32) -> (i32, i32) {
    %c0_i32 = arith.constant 0 : i32
    %c0_i32_0 = arith.constant 0 : i32
    %c0_i32_1 = arith.constant 0 : i32
    return %c0_i32, %c0_i32_0 : i32, i32
  }
  func.func @transform_2(%arg0: i32) -> (i32, i32) {
    %c0_i32 = arith.constant 0 : i32
    %c0_i32_0 = arith.constant 0 : i32
    %c0_i32_1 = arith.constant 0 : i32
    return %c0_i32, %c0_i32_0 : i32, i32
  }
  func.func @transform_3(%arg0: i32) -> (i32, i32) {
    %c0_i32 = arith.constant 0 : i32
    %c0_i32_0 = arith.constant 0 : i32
    %c0_i32_1 = arith.constant 0 : i32
    return %c0_i32, %c0_i32_0 : i32, i32
  }
  func.func @transform_4(%arg0: i32) -> (i32, i32) {
    %c0_i32 = arith.constant 0 : i32
    %c0_i32_0 = arith.constant 0 : i32
    %c0_i32_1 = arith.constant 0 : i32
    return %c0_i32, %c0_i32_0 : i32, i32
  }
  func.func @transform_5(%arg0: i32) -> (i32, i32) {
    %c0_i32 = arith.constant 0 : i32
    %c0_i32_0 = arith.constant 0 : i32
    %c0_i32_1 = arith.constant 0 : i32
    return %c0_i32, %c0_i32_0 : i32, i32
  }
  func.func @transform_6(%arg0: i32) -> (i32, i32) {
    %c0_i32 = arith.constant 0 : i32
    %c0_i32_0 = arith.constant 0 : i32
    %c0_i32_1 = arith.constant 0 : i32
    return %c0_i32, %c0_i32_0 : i32, i32
  }
  func.func @transform_7(%arg0: i32) -> (i32, i32) {
    %c0_i32 = arith.constant 0 : i32
    %c0_i32_0 = arith.constant 0 : i32
    %c0_i32_1 = arith.constant 0 : i32
    return %c0_i32, %c0_i32_0 : i32, i32
  }
  func.func @transform_8(%arg0: i32) -> (i32, i32) {
    %c0_i32 = arith.constant 0 : i32
    %c0_i32_0 = arith.constant 0 : i32
    %c0_i32_1 = arith.constant 0 : i32
    return %c0_i32, %c0_i32_0 : i32, i32
  }
}

</mosaic_0001>

<llo_original>
// kernel: tpu_custom_call.1
$region0: #{tpu_custom_call.1}
  #allocation0 [shape = 'u32[]', space=smem, size = 0x4, offset = 0x4, fixed_abs, tag = 'smem constant byte address 0x4 - core index']
  #allocation1 [shape = 'u32[144,128]{1,0:T(1,128)}', space=vmem, size = 0x12000, scoped, tag = 'internal scratch']
  %s0 = inlined_call_operand.vmem [shape: f32[2,8,5], index: 0, kind: input, shape index: {}]
  %s1 = inlined_call_operand.vmem [shape: f32[5,32], index: 1, kind: input, shape index: {}]
  %s2 = inlined_call_operand.vmem [shape: f32[8,32], index: 2, kind: input, shape index: {}]
  %s3 = inlined_call_operand.vmem [shape: f32[1,32], index: 3, kind: input, shape index: {}]
  %s4 = inlined_call_operand.vmem [shape: f32[16,32], index: 4, kind: input, shape index: {}]
  %s5 = inlined_call_operand.vmem [shape: f32[1,32], index: 5, kind: input, shape index: {}]
  %s6 = inlined_call_operand.vmem [shape: f32[8,5], index: 6, kind: input, shape index: {}]
  %s7 = inlined_call_operand.vmem [shape: f32[1,5], index: 7, kind: input, shape index: {}]
  %s8 = inlined_call_operand.hbm [shape: f32[2,5], index: 8, kind: output, shape index: {}]
  %s9 = sld [smem:[#allocation0]]
  $region42: #{tpu_custom_call.1} parent=0
    _
  %s11 = ssub.s32 1, %s9
  %s12 = scalar_select 0, %s11, %s9
  $region1: #{tpu_custom_call.1} parent=0
    #allocation2 [shape = 'u8[1024]{0}', space=vmem, size = 0x400, scoped, tag = 'output window, operand 0, single buffered']
    #allocation3 [shape = 's32[1]{0}', space=sflag, size = 0x4, scoped, tag = 'scoped memory for tpu_custom_call.1']
    %13 = vsyncpa [#allocation3], 0
    // Predicated region
    $region2: #{tpu_custom_call.1} parent=1 // pred_check
      _
    $region3: #{tpu_custom_call.1} parent=1 // pred_check_branch
      %15 = sbr.rel (0) target = $region5
    $region4: #{tpu_custom_call.1} parent=1 // pred_region
      _
    $region5: #{tpu_custom_call.1} parent=1 // pred_fallthru
      _
    // Predicated region
    $region6: #{tpu_custom_call.1} parent=1 // pred_check
      _
    $region7: #{tpu_custom_call.1} parent=1 // pred_check_branch
      %17 = sbr.rel (0) target = $region9
    $region8: #{tpu_custom_call.1} parent=1 // pred_region
      _
    $region9: #{tpu_custom_call.1} parent=1 // pred_fallthru
      _
    // Predicated region
    $region10: #{tpu_custom_call.1} parent=1 // pred_check
      _
    $region11: #{tpu_custom_call.1} parent=1 // pred_check_branch
      %19 = sbr.rel (0) target = $region13
    $region12: #{tpu_custom_call.1} parent=1 // pred_region
      _
    $region13: #{tpu_custom_call.1} parent=1 // pred_fallthru
      _
    // Predicated region
    $region14: #{tpu_custom_call.1} parent=1 // pred_check
      _
    $region15: #{tpu_custom_call.1} parent=1 // pred_check_branch
      %21 = sbr.rel (0) target = $region17
    $region16: #{tpu_custom_call.1} parent=1 // pred_region
      _
    $region17: #{tpu_custom_call.1} parent=1 // pred_fallthru
      _
    // Predicated region
    $region18: #{tpu_custom_call.1} parent=1 // pred_check
      _
    $region19: #{tpu_custom_call.1} parent=1 // pred_check_branch
      %23 = sbr.rel (0) target = $region21
    $region20: #{tpu_custom_call.1} parent=1 // pred_region
      _
    $region21: #{tpu_custom_call.1} parent=1 // pred_fallthru
      _
    // Predicated region
    $region22: #{tpu_custom_call.1} parent=1 // pred_check
      _
    $region23: #{tpu_custom_call.1} parent=1 // pred_check_branch
      %25 = sbr.rel (0) target = $region25
    $region24: #{tpu_custom_call.1} parent=1 // pred_region
      _
    $region25: #{tpu_custom_call.1} parent=1 // pred_fallthru
      _
    // Predicated region
    $region26: #{tpu_custom_call.1} parent=1 // pred_check
      _
    $region27: #{tpu_custom_call.1} parent=1 // pred_check_branch
      %27 = sbr.rel (0) target = $region29
    $region28: #{tpu_custom_call.1} parent=1 // pred_region
      _
    $region29: #{tpu_custom_call.1} parent=1 // pred_fallthru
      _
    // Predicated region
    $region30: #{tpu_custom_call.1} parent=1 // pred_check
      _
    $region31: #{tpu_custom_call.1} parent=1 // pred_check_branch
      %29 = sbr.rel (0) target = $region33
    $region32: #{tpu_custom_call.1} parent=1 // pred_region
      _
    $region33: #{tpu_custom_call.1} parent=1 // pred_fallthru
      _
    %v30 = vld [vmem:[%s2] sm:$0xff]
    %v31 = vld [vmem:[%s4] sm:$0xff]
    %v32 = vld [vmem:[%s4 + $0x8] sm:$0xff]
    %v33 = vld [vmem:[%s5] sm:$0x1]
    %v35 = vlaneseq
    %v36 = vshrl.u32 %v35, 7
    %v37 = vsub.s32 0, %v36
    %v38 = vrot.slane %v33, %v37
    %v40 = vld [vmem:[%s0] sm:$0xff]
    %v41 = vld [vmem:[%s0 + $0x8] sm:$0xff]
    %v42 = vld [vmem:[%s1] sm:$0x1f]
    %v43 = vld [vmem:[%s3] sm:$0x1]
    %v45 = vlaneseq
    %v46 = vshrl.u32 %v45, 7
    %v47 = vsub.s32 0, %v46
    %v48 = vrot.slane %v43, %v47
    %vm50 = vcmask 39936
    %v52 = vsel %vm50, %v40, 0
    %v55 = vsel %vm50, %v41, 0
    %vm57 = vcmask 1044480
    %v59 = vsel %vm57, %v42, 0
    %61 = vmatprep.subr.mxu0 0.0
    %62 = vmatpush1.msra.mxu0 %v59
    %63 = vmatprep.subr.mxu0 0.0
    %64 = vmatpush1.msra.mxu0 0.0
    %65 = vmatprep.subr.mxu0 0.0
    %66 = vmatpush1.msra.mxu0 0.0
    %67 = vmatprep.subr.mxu0 0.0
    %68 = vmatpush1.msra.mxu0 0.0
    %69 = vmatprep.subr.mxu0 0.0
    %70 = vmatpush1.msra.mxu0 0.0
    %71 = vmatprep.subr.mxu0 0.0
    %72 = vmatpush1.msra.mxu0 0.0
    %73 = vmatprep.subr.mxu0 0.0
    %74 = vmatpush1.msra.mxu0 0.0
    %75 = vmatprep.subr.mxu0 0.0
    %76 = vmatpush1.msra.mxu0 0.0
    %77 = vmatprep.subr.mxu0 0.0
    %78 = vmatpush1.msra.mxu0 0.0
    %79 = vmatprep.subr.mxu0 0.0
    %80 = vmatpush1.msra.mxu0 0.0
    %81 = vmatprep.subr.mxu0 0.0
    %82 = vmatpush1.msra.mxu0 0.0
    %83 = vmatprep.subr.mxu0 0.0
    %84 = vmatpush1.msra.mxu0 0.0
    %85 = vmatprep.subr.mxu0 0.0
    %86 = vmatpush1.msra.mxu0 0.0
    %87 = vmatprep.subr.mxu0 0.0
    %88 = vmatpush1.msra.mxu0 0.0
    %89 = vmatprep.subr.mxu0 0.0
    %90 = vmatpush1.msra.mxu0 0.0
    %91 = vmatprep.subr.mxu0 0.0
    %92 = vmatpush1.msra.mxu0 0.0
    %93 = vmatprep.subr.mxu0 0.0
    %94 = vmatpush1.msra.mxu0 0.0
    %95 = vmatprep.subr.mxu0 0.0
    %96 = vmatpush1.msra.mxu0 0.0
    %97 = vmatprep.subr.mxu0 0.0
    %98 = vmatpush1.msra.mxu0 0.0
    %99 = vmatprep.subr.mxu0 0.0
    %100 = vmatpush1.msra.mxu0 0.0
    %101 = vmatprep.subr.mxu0 0.0
    %102 = vmatpush1.msra.mxu0 0.0
    %103 = vmatprep.subr.mxu0 0.0
    %104 = vmatpush1.msra.mxu0 0.0
    %105 = vmatprep.subr.mxu0 0.0
    %106 = vmatpush1.msra.mxu0 0.0
    %107 = vmatprep.subr.mxu0 0.0
    %108 = vmatpush1.msra.mxu0 0.0
    %109 = vmatprep.subr.mxu0 0.0
    %110 = vmatpush1.msra.mxu0 0.0
    %111 = vmatprep.subr.mxu0 0.0
    %112 = vmatpush1.msra.mxu0 0.0
    %113 = vmatprep.subr.mxu0 0.0
    %114 = vmatpush1.msra.mxu0 0.0
    %115 = vmatprep.subr.mxu0 0.0
    %116 = vmatpush1.msra.mxu0 0.0
    %117 = vmatprep.subr.mxu0 0.0
    %118 = vmatpush1.msra.mxu0 0.0
    %119 = vmatprep.subr.mxu0 0.0
    %120 = vmatpush1.msra.mxu0 0.0
    %121 = vmatprep.subr.mxu0 0.0
    %122 = vmatpush1.msra.mxu0 0.0
    %123 = vmatprep.subr.mxu0 0.0
    %124 = vmatpush1.msra.mxu0 0.0
    %125 = vmatprep.mubr.f32.mxu0 0.0
    %126 = vmatmul.mubr.f32.gmra.mrb[0].mxu0 %v52
    %v127 = vpop.f32.mrb[0].mxu0
    %v128 = vadd.f32 %v48, %v127
    %v129 = vpop.f32.mrb[0].mxu0
    %130 = vmatprep.mubr.f32.mxu0 0.0
    %131 = vmatmul.mubr.f32.gmra.mrb[0].mxu0 %v55
    %v132 = vpop.f32.mrb[0].mxu0
    %v133 = vadd.f32 %v48, %v132
    %v134 = vpop.f32.mrb[0].mxu0
    %135 = vdwg.mxu0
    %vm136 = vcmask 64512
    %v138 = vsel %vm136, 0.0, 0
    %140 = vmatprep.subr.mxu0 0.0
    %141 = vmatpush1.msra.mxu0 %v30
    %142 = vmatprep.subr.mxu0 0.0
    %143 = vmatpush1.msra.mxu0 0.0
    %144 = vmatprep.subr.mxu0 0.0
    %145 = vmatpush1.msra.mxu0 0.0
    %146 = vmatprep.subr.mxu0 0.0
    %147 = vmatpush1.msra.mxu0 0.0
    %148 = vmatprep.subr.mxu0 0.0
    %149 = vmatpush1.msra.mxu0 0.0
    %150 = vmatprep.subr.mxu0 0.0
    %151 = vmatpush1.msra.mxu0 0.0
    %152 = vmatprep.subr.mxu0 0.0
    %153 = vmatpush1.msra.mxu0 0.0
    %154 = vmatprep.subr.mxu0 0.0
    %155 = vmatpush1.msra.mxu0 0.0
    %156 = vmatprep.subr.mxu0 0.0
    %157 = vmatpush1.msra.mxu0 0.0
    %158 = vmatprep.subr.mxu0 0.0
    %159 = vmatpush1.msra.mxu0 0.0
    %160 = vmatprep.subr.mxu0 0.0
    %161 = vmatpush1.msra.mxu0 0.0
    %162 = vmatprep.subr.mxu0 0.0
    %163 = vmatpush1.msra.mxu0 0.0
    %164 = vmatprep.subr.mxu0 0.0
    %165 = vmatpush1.msra.mxu0 0.0
    %166 = vmatprep.subr.mxu0 0.0
    %167 = vmatpush1.msra.mxu0 0.0
    %168 = vmatprep.subr.mxu0 0.0
    %169 = vmatpush1.msra.mxu0 0.0
    %170 = vmatprep.subr.mxu0 0.0
    %171 = vmatpush1.msra.mxu0 0.0
    %172 = vmatprep.subr.mxu0 0.0
    %173 = vmatpush1.msra.mxu0 0.0
    %174 = vmatprep.subr.mxu0 0.0
    %175 = vmatpush1.msra.mxu0 0.0
    %176 = vmatprep.subr.mxu0 0.0
    %177 = vmatpush1.msra.mxu0 0.0
    %178 = vmatprep.subr.mxu0 0.0
    %179 = vmatpush1.msra.mxu0 0.0
    %180 = vmatprep.subr.mxu0 0.0
    %181 = vmatpush1.msra.mxu0 0.0
    %182 = vmatprep.subr.mxu0 0.0
    %183 = vmatpush1.msra.mxu0 0.0
    %184 = vmatprep.subr.mxu0 0.0
    %185 = vmatpush1.msra.mxu0 0.0
    %186 = vmatprep.subr.mxu0 0.0
    %187 = vmatpush1.msra.mxu0 0.0
    %188 = vmatprep.subr.mxu0 0.0
    %189 = vmatpush1.msra.mxu0 0.0
    %190 = vmatprep.subr.mxu0 0.0
    %191 = vmatpush1.msra.mxu0 0.0
    %192 = vmatprep.subr.mxu0 0.0
    %193 = vmatpush1.msra.mxu0 0.0
    %194 = vmatprep.subr.mxu0 0.0
    %195 = vmatpush1.msra.mxu0 0.0
    %196 = vmatprep.subr.mxu0 0.0
    %197 = vmatpush1.msra.mxu0 0.0
    %198 = vmatprep.subr.mxu0 0.0
    %199 = vmatpush1.msra.mxu0 0.0
    %200 = vmatprep.subr.mxu0 0.0
    %201 = vmatpush1.msra.mxu0 0.0
    %202 = vmatprep.subr.mxu0 0.0
    %203 = vmatpush1.msra.mxu0 0.0
    %204 = vmatprep.mubr.f32.mxu0 0.0
    %205 = vmatmul.mubr.f32.gmra.mrb[0].mxu0 %v138
    %v206 = vpop.f32.mrb[0].mxu0
    %v207 = vadd.f32 0.0, %v206
    %v208 = vpop.f32.mrb[0].mxu0
    %209 = vdwg.mxu0
    %v211 = vrot.slane %v207, 1
    %v214 = vadd.f32 %v128, %v207
    %v215 = vadd.f32 %v133, %v211
    %v216 = vtanh.pop %v214
    %v217 = vtanh.pop %v215
    %v218 = vmul.f32 %v216, 0.5
    %v219 = vmul.f32 %v217, 0.5
    %v220 = vadd.f32 %v218, 0.5
    %v221 = vadd.f32 %v219, 0.5
    %v222 = vmul.f32 %v220, 0.0
    %v223 = vmul.f32 %v221, 0.0
    %226 = vrot.lane.b32.xlu0 %v216, 104
    %v227 = vpop.permute.xlu0 %226
    %228 = vrot.lane.b32.xlu0 %v217, 104
    %v229 = vpop.permute.xlu0 %228
    %v232 = vmul.f32 %v220, %v227
    %v233 = vmul.f32 %v221, %v229
    %236 = vrot.lane.b32.xlu0 %v232, 8
    %v237 = vpop.permute.xlu0 %236
    %238 = vrot.lane.b32.xlu0 %v233, 8
    %v239 = vpop.permute.xlu0 %238
    %v242 = vadd.f32 %v222, %v237
    %v243 = vadd.f32 %v223, %v239
    %v244 = vtanh.pop %v242
    %v245 = vtanh.pop %v243
    %248 = vrot.lane.b32.xlu0 %v244, 8
    %v249 = vpop.permute.xlu0 %248
    %250 = vrot.lane.b32.xlu0 %v245, 8
    %v251 = vpop.permute.xlu0 %250
    %v254 = vmul.f32 %v220, %v249
    %v255 = vmul.f32 %v221, %v251
    %v258 = vrot.slane %v255, 7
    %vm259 = vcmask 1041409
    %v260 = vsel %vm259, %v258, %v254
    %261 = vrot.lane.b32.xlu0 %v260, 112
    %v262 = vpop.permute.xlu0 %261
    %v264 = vsel %vm136, %v262, 0.0
    %vm265 = vcmask 130048
    %v267 = vsel %vm265, %v264, 0
    %269 = vmatprep.subr.mxu0 0.0
    %270 = vmatpush1.msra.mxu0 %v31
    %271 = vmatprep.subr.mxu0 0.0
    %272 = vmatpush1.msra.mxu0 %v32
    %273 = vmatprep.subr.mxu0 0.0
    %274 = vmatpush1.msra.mxu0 0.0
    %275 = vmatprep.subr.mxu0 0.0
    %276 = vmatpush1.msra.mxu0 0.0
    %277 = vmatprep.subr.mxu0 0.0
    %278 = vmatpush1.msra.mxu0 0.0
    %279 = vmatprep.subr.mxu0 0.0
    %280 = vmatpush1.msra.mxu0 0.0
    %281 = vmatprep.subr.mxu0 0.0
    %282 = vmatpush1.msra.mxu0 0.0
    %283 = vmatprep.subr.mxu0 0.0
    %284 = vmatpush1.msra.mxu0 0.0
    %285 = vmatprep.subr.mxu0 0.0
    %286 = vmatpush1.msra.mxu0 0.0
    %287 = vmatprep.subr.mxu0 0.0
    %288 = vmatpush1.msra.mxu0 0.0
    %289 = vmatprep.subr.mxu0 0.0
    %290 = vmatpush1.msra.mxu0 0.0
    %291 = vmatprep.subr.mxu0 0.0
    %292 = vmatpush1.msra.mxu0 0.0
    %293 = vmatprep.subr.mxu0 0.0
    %294 = vmatpush1.msra.mxu0 0.0
    %295 = vmatprep.subr.mxu0 0.0
    %296 = vmatpush1.msra.mxu0 0.0
    %297 = vmatprep.subr.mxu0 0.0
    %298 = vmatpush1.msra.mxu0 0.0
    %299 = vmatprep.subr.mxu0 0.0
    %300 = vmatpush1.msra.mxu0 0.0
    %301 = vmatprep.subr.mxu0 0.0
    %302 = vmatpush1.msra.mxu0 0.0
    %303 = vmatprep.subr.mxu0 0.0
    %304 = vmatpush1.msra.mxu0 0.0
    %305 = vmatprep.subr.mxu0 0.0
    %306 = vmatpush1.msra.mxu0 0.0
    %307 = vmatprep.subr.mxu0 0.0
    %308 = vmatpush1.msra.mxu0 0.0
    %309 = vmatprep.subr.mxu0 0.0
    %310 = vmatpush1.msra.mxu0 0.0
    %311 = vmatprep.subr.mxu0 0.0
    %312 = vmatpush1.msra.mxu0 0.0
    %313 = vmatprep.subr.mxu0 0.0
    %314 = vmatpush1.msra.mxu0 0.0
    %315 = vmatprep.subr.mxu0 0.0
    %316 = vmatpush1.msra.mxu0 0.0
    %317 = vmatprep.subr.mxu0 0.0
    %318 = vmatpush1.msra.mxu0 0.0
    %319 = vmatprep.subr.mxu0 0.0
    %320 = vmatpush1.msra.mxu0 0.0
    %321 = vmatprep.subr.mxu0 0.0
    %322 = vmatpush1.msra.mxu0 0.0
    %323 = vmatprep.subr.mxu0 0.0
    %324 = vmatpush1.msra.mxu0 0.0
    %325 = vmatprep.subr.mxu0 0.0
    %326 = vmatpush1.msra.mxu0 0.0
    %327 = vmatprep.subr.mxu0 0.0
    %328 = vmatpush1.msra.mxu0 0.0
    %329 = vmatprep.subr.mxu0 0.0
    %330 = vmatpush1.msra.mxu0 0.0
    %331 = vmatprep.subr.mxu0 0.0
    %332 = vmatpush1.msra.mxu0 0.0
    %333 = vmatprep.mubr.f32.mxu0 0.0
    %334 = vmatmul.mubr.f32.gmra.mrb[0].mxu0 %v267
    %v335 = vpop.f32.mrb[0].mxu0
    %v336 = vadd.f32 %v38, %v335
    %v337 = vpop.f32.mrb[0].mxu0
    %338 = vdwg.mxu0
    %v339 = vtanh.pop %v336
    %v340 = vmul.f32 %v339, 0.5
    %v341 = vadd.f32 %v340, 0.5
    %v342 = vmul.f32 %v341, 0.0
    %344 = vrot.lane.b32.xlu0 %v339, 104
    %v345 = vpop.permute.xlu0 %344
    %v347 = vmul.f32 %v341, %v345
    %349 = vrot.lane.b32.xlu0 %v347, 8
    %v350 = vpop.permute.xlu0 %349
    %v352 = vadd.f32 %v342, %v350
    %v353 = vtanh.pop %v352
    %355 = vrot.lane.b32.xlu0 %v353, 8
    %v356 = vpop.permute.xlu0 %355
    %v358 = vmul.f32 %v341, %v356
    %v359 = vsel %vm136, %v262, 0
    %361 = vmatprep.subr.mxu0 0.0
    %362 = vmatpush1.msra.mxu0 %v30
    %363 = vmatprep.subr.mxu0 0.0
    %364 = vmatpush1.msra.mxu0 0.0
    %365 = vmatprep.subr.mxu0 0.0
    %366 = vmatpush1.msra.mxu0 0.0
    %367 = vmatprep.subr.mxu0 0.0
    %368 = vmatpush1.msra.mxu0 0.0
    %369 = vmatprep.subr.mxu0 0.0
    %370 = vmatpush1.msra.mxu0 0.0
    %371 = vmatprep.subr.mxu0 0.0
    %372 = vmatpush1.msra.mxu0 0.0
    %373 = vmatprep.subr.mxu0 0.0
    %374 = vmatpush1.msra.mxu0 0.0
    %375 = vmatprep.subr.mxu0 0.0
    %376 = vmatpush1.msra.mxu0 0.0
    %377 = vmatprep.subr.mxu0 0.0
    %378 = vmatpush1.msra.mxu0 0.0
    %379 = vmatprep.subr.mxu0 0.0
    %380 = vmatpush1.msra.mxu0 0.0
    %381 = vmatprep.subr.mxu0 0.0
    %382 = vmatpush1.msra.mxu0 0.0
    %383 = vmatprep.subr.mxu0 0.0
    %384 = vmatpush1.msra.mxu0 0.0
    %385 = vmatprep.subr.mxu0 0.0
    %386 = vmatpush1.msra.mxu0 0.0
    %387 = vmatprep.subr.mxu0 0.0
    %388 = vmatpush1.msra.mxu0 0.0
    %389 = vmatprep.subr.mxu0 0.0
    %390 = vmatpush1.msra.mxu0 0.0
    %391 = vmatprep.subr.mxu0 0.0
    %392 = vmatpush1.msra.mxu0 0.0
    %393 = vmatprep.subr.mxu0 0.0
    %394 = vmatpush1.msra.mxu0 0.0
    %395 = vmatprep.subr.mxu0 0.0
    %396 = vmatpush1.msra.mxu0 0.0
    %397 = vmatprep.subr.mxu0 0.0
    %398 = vmatpush1.msra.mxu0 0.0
    %399 = vmatprep.subr.mxu0 0.0
    %400 = vmatpush1.msra.mxu0 0.0
    %401 = vmatprep.subr.mxu0 0.0
    %402 = vmatpush1.msra.mxu0 0.0
    %403 = vmatprep.subr.mxu0 0.0
    %404 = vmatpush1.msra.mxu0 0.0
    %405 = vmatprep.subr.mxu0 0.0
    %406 = vmatpush1.msra.mxu0 0.0
    %407 = vmatprep.subr.mxu0 0.0
    %408 = vmatpush1.msra.mxu0 0.0
    %409 = vmatprep.subr.mxu0 0.0
    %410 = vmatpush1.msra.mxu0 0.0
    %411 = vmatprep.subr.mxu0 0.0
    %412 = vmatpush1.msra.mxu0 0.0
    %413 = vmatprep.subr.mxu0 0.0
    %414 = vmatpush1.msra.mxu0 0.0
    %415 = vmatprep.subr.mxu0 0.0
    %416 = vmatpush1.msra.mxu0 0.0
    %417 = vmatprep.subr.mxu0 0.0
    %418 = vmatpush1.msra.mxu0 0.0
    %419 = vmatprep.subr.mxu0 0.0
    %420 = vmatpush1.msra.mxu0 0.0
    %421 = vmatprep.subr.mxu0 0.0
    %422 = vmatpush1.msra.mxu0 0.0
    %423 = vmatprep.subr.mxu0 0.0
    %424 = vmatpush1.msra.mxu0 0.0
    %425 = vmatprep.mubr.f32.mxu0 0.0
    %426 = vmatmul.mubr.f32.gmra.mrb[0].mxu0 %v359
    %v427 = vpop.f32.mrb[0].mxu0
    %v428 = vadd.f32 0.0, %v427
    %v429 = vpop.f32.mrb[0].mxu0
    %430 = vdwg.mxu0
    %v432 = vrot.slane %v428, 7
    %v435 = vadd.f32 %v128, %v432
    %v436 = vadd.f32 %v133, %v428
    %v437 = vtanh.pop %v435
    %v438 = vtanh.pop %v436
    %v439 = vmul.f32 %v437, 0.5
    %v440 = vmul.f32 %v438, 0.5
    %v441 = vadd.f32 %v439, 0.5
    %v442 = vadd.f32 %v440, 0.5
    %v445 = vrot.slane %v242, 7
    %v446 = vrot.slane %v243, 7
    %v449 = vmul.f32 %v441, %v445
    %v450 = vmul.f32 %v442, %v446
    %453 = vrot.lane.b32.xlu0 %v437, 104
    %v454 = vpop.permute.xlu0 %453
    %455 = vrot.lane.b32.xlu0 %v438, 104
    %v456 = vpop.permute.xlu0 %455
    %v459 = vmul.f32 %v441, %v454
    %v460 = vmul.f32 %v442, %v456
    %463 = vrot.lane.b32.xlu0 %v459, 8
    %v464 = vpop.permute.xlu0 %463
    %465 = vrot.lane.b32.xlu0 %v460, 8
    %v466 = vpop.permute.xlu0 %465
    %v469 = vadd.f32 %v449, %v464
    %v470 = vadd.f32 %v450, %v466
    %v471 = vtanh.pop %v469
    %v472 = vtanh.pop %v470
    %475 = vrot.lane.b32.xlu0 %v471, 8
    %v476 = vpop.permute.xlu0 %475
    %477 = vrot.lane.b32.xlu0 %v472, 8
    %v478 = vpop.permute.xlu0 %477
    %v481 = vmul.f32 %v441, %v476
    %v482 = vmul.f32 %v442, %v478
    %v485 = vrot.slane %v482, 7
    %vm486 = vcmask 1042434
    %v487 = vsel %vm486, %v485, %v481
    %488 = vrot.lane.b32.xlu0 %v487, 112
    %v489 = vpop.permute.xlu0 %488
    %v492 = vrot.slane %v358, 7
    %493 = vrot.lane.b32.xlu0 %v492, 120
    %v494 = vpop.permute.xlu0 %493
    %v496 = vsel %vm136, %v489, %v494
    %v498 = vrot.slane %v496, 1
    %v499 = vsel %vm265, %v498, 0
    %501 = vmatprep.subr.mxu0 0.0
    %502 = vmatpush1.msra.mxu0 %v31
    %503 = vmatprep.subr.mxu0 0.0
    %504 = vmatpush1.msra.mxu0 %v32
    %505 = vmatprep.subr.mxu0 0.0
    %506 = vmatpush1.msra.mxu0 0.0
    %507 = vmatprep.subr.mxu0 0.0
    %508 = vmatpush1.msra.mxu0 0.0
    %509 = vmatprep.subr.mxu0 0.0
    %510 = vmatpush1.msra.mxu0 0.0
    %511 = vmatprep.subr.mxu0 0.0
    %512 = vmatpush1.msra.mxu0 0.0
    %513 = vmatprep.subr.mxu0 0.0
    %514 = vmatpush1.msra.mxu0 0.0
    %515 = vmatprep.subr.mxu0 0.0
    %516 = vmatpush1.msra.mxu0 0.0
    %517 = vmatprep.subr.mxu0 0.0
    %518 = vmatpush1.msra.mxu0 0.0
    %519 = vmatprep.subr.mxu0 0.0
    %520 = vmatpush1.msra.mxu0 0.0
    %521 = vmatprep.subr.mxu0 0.0
    %522 = vmatpush1.msra.mxu0 0.0
    %523 = vmatprep.subr.mxu0 0.0
    %524 = vmatpush1.msra.mxu0 0.0
    %525 = vmatprep.subr.mxu0 0.0
    %526 = vmatpush1.msra.mxu0 0.0
    %527 = vmatprep.subr.mxu0 0.0
    %528 = vmatpush1.msra.mxu0 0.0
    %529 = vmatprep.subr.mxu0 0.0
    %530 = vmatpush1.msra.mxu0 0.0
    %531 = vmatprep.subr.mxu0 0.0
    %532 = vmatpush1.msra.mxu0 0.0
    %533 = vmatprep.subr.mxu0 0.0
    %534 = vmatpush1.msra.mxu0 0.0
    %535 = vmatprep.subr.mxu0 0.0
    %536 = vmatpush1.msra.mxu0 0.0
    %537 = vmatprep.subr.mxu0 0.0
    %538 = vmatpush1.msra.mxu0 0.0
    %539 = vmatprep.subr.mxu0 0.0
    %540 = vmatpush1.msra.mxu0 0.0
    %541 = vmatprep.subr.mxu0 0.0
    %542 = vmatpush1.msra.mxu0 0.0
    %543 = vmatprep.subr.mxu0 0.0
    %544 = vmatpush1.msra.mxu0 0.0
    %545 = vmatprep.subr.mxu0 0.0
    %546 = vmatpush1.msra.mxu0 0.0
    %547 = vmatprep.subr.mxu0 0.0
    %548 = vmatpush1.msra.mxu0 0.0
    %549 = vmatprep.subr.mxu0 0.0
    %550 = vmatpush1.msra.mxu0 0.0
    %551 = vmatprep.subr.mxu0 0.0
    %552 = vmatpush1.msra.mxu0 0.0
    %553 = vmatprep.subr.mxu0 0.0
    %554 = vmatpush1.msra.mxu0 0.0
    %555 = vmatprep.subr.mxu0 0.0
    %556 = vmatpush1.msra.mxu0 0.0
    %557 = vmatprep.subr.mxu0 0.0
    %558 = vmatpush1.msra.mxu0 0.0
    %559 = vmatprep.subr.mxu0 0.0
    %560 = vmatpush1.msra.mxu0 0.0
    %561 = vmatprep.subr.mxu0 0.0
    %562 = vmatpush1.msra.mxu0 0.0
    %563 = vmatprep.subr.mxu0 0.0
    %564 = vmatpush1.msra.mxu0 0.0
    %565 = vmatprep.mubr.f32.mxu0 0.0
    %566 = vmatmul.mubr.f32.gmra.mrb[0].mxu0 %v499
    %v567 = vpop.f32.mrb[0].mxu0
    %v568 = vadd.f32 %v38, %v567
    %v569 = vpop.f32.mrb[0].mxu0
    %570 = vdwg.mxu0
    %v571 = vtanh.pop %v568
    %v572 = vmul.f32 %v571, 0.5
    %v573 = vadd.f32 %v572, 0.5
    %v574 = vmul.f32 %v573, %v352
    %576 = vrot.lane.b32.xlu0 %v571, 104
    %v577 = vpop.permute.xlu0 %576
    %v579 = vmul.f32 %v573, %v577
    %581 = vrot.lane.b32.xlu0 %v579, 8
    %v582 = vpop.permute.xlu0 %581
    %v584 = vadd.f32 %v574, %v582
    %v585 = vtanh.pop %v584
    %587 = vrot.lane.b32.xlu0 %v585, 8
    %v588 = vpop.permute.xlu0 %587
    %v590 = vmul.f32 %v573, %v588
    %v591 = vrot.slane %v481, 1
    %v592 = vsel %vm259, %v482, %v591
    %593 = vrot.lane.b32.xlu0 %v592, 112
    %v594 = vpop.permute.xlu0 %593
    %v595 = vsel %vm136, %v594, 0
    %597 = vmatprep.subr.mxu0 0.0
    %598 = vmatpush1.msra.mxu0 %v30
    %599 = vmatprep.subr.mxu0 0.0
    %600 = vmatpush1.msra.mxu0 0.0
    %601 = vmatprep.subr.mxu0 0.0
    %602 = vmatpush1.msra.mxu0 0.0
    %603 = vmatprep.subr.mxu0 0.0
    %604 = vmatpush1.msra.mxu0 0.0
    %605 = vmatprep.subr.mxu0 0.0
    %606 = vmatpush1.msra.mxu0 0.0
    %607 = vmatprep.subr.mxu0 0.0
    %608 = vmatpush1.msra.mxu0 0.0
    %609 = vmatprep.subr.mxu0 0.0
    %610 = vmatpush1.msra.mxu0 0.0
    %611 = vmatprep.subr.mxu0 0.0
    %612 = vmatpush1.msra.mxu0 0.0
    %613 = vmatprep.subr.mxu0 0.0
    %614 = vmatpush1.msra.mxu0 0.0
    %615 = vmatprep.subr.mxu0 0.0
    %616 = vmatpush1.msra.mxu0 0.0
    %617 = vmatprep.subr.mxu0 0.0
    %618 = vmatpush1.msra.mxu0 0.0
    %619 = vmatprep.subr.mxu0 0.0
    %620 = vmatpush1.msra.mxu0 0.0
    %621 = vmatprep.subr.mxu0 0.0
    %622 = vmatpush1.msra.mxu0 0.0
    %623 = vmatprep.subr.mxu0 0.0
    %624 = vmatpush1.msra.mxu0 0.0
    %625 = vmatprep.subr.mxu0 0.0
    %626 = vmatpush1.msra.mxu0 0.0
    %627 = vmatprep.subr.mxu0 0.0
    %628 = vmatpush1.msra.mxu0 0.0
    %629 = vmatprep.subr.mxu0 0.0
    %630 = vmatpush1.msra.mxu0 0.0
    %631 = vmatprep.subr.mxu0 0.0
    %632 = vmatpush1.msra.mxu0 0.0
    %633 = vmatprep.subr.mxu0 0.0
    %634 = vmatpush1.msra.mxu0 0.0
    %635 = vmatprep.subr.mxu0 0.0
    %636 = vmatpush1.msra.mxu0 0.0
    %637 = vmatprep.subr.mxu0 0.0
    %638 = vmatpush1.msra.mxu0 0.0
    %639 = vmatprep.subr.mxu0 0.0
    %640 = vmatpush1.msra.mxu0 0.0
    %641 = vmatprep.subr.mxu0 0.0
    %642 = vmatpush1.msra.mxu0 0.0
    %643 = vmatprep.subr.mxu0 0.0
    %644 = vmatpush1.msra.mxu0 0.0
    %645 = vmatprep.subr.mxu0 0.0
    %646 = vmatpush1.msra.mxu0 0.0
    %647 = vmatprep.subr.mxu0 0.0
    %648 = vmatpush1.msra.mxu0 0.0
    %649 = vmatprep.subr.mxu0 0.0
    %650 = vmatpush1.msra.mxu0 0.0
    %651 = vmatprep.subr.mxu0 0.0
    %652 = vmatpush1.msra.mxu0 0.0
    %653 = vmatprep.subr.mxu0 0.0
    %654 = vmatpush1.msra.mxu0 0.0
    %655 = vmatprep.subr.mxu0 0.0
    %656 = vmatpush1.msra.mxu0 0.0
    %657 = vmatprep.subr.mxu0 0.0
    %658 = vmatpush1.msra.mxu0 0.0
    %659 = vmatprep.subr.mxu0 0.0
    %660 = vmatpush1.msra.mxu0 0.0
    %661 = vmatprep.mubr.f32.mxu0 0.0
    %662 = vmatmul.mubr.f32.gmra.mrb[0].mxu0 %v595
    %v663 = vpop.f32.mrb[0].mxu0
    %v664 = vadd.f32 0.0, %v663
    %v665 = vpop.f32.mrb[0].mxu0
    %666 = vdwg.mxu0
    %v668 = vrot.slane %v664, 6
    %v669 = vrot.slane %v664, 7
    %v672 = vadd.f32 %v128, %v668
    %v673 = vadd.f32 %v133, %v669
    %v674 = vtanh.pop %v672
    %v675 = vtanh.pop %v673
    %v676 = vmul.f32 %v674, 0.5
    %v677 = vmul.f32 %v675, 0.5
    %v678 = vadd.f32 %v676, 0.5
    %v679 = vadd.f32 %v677, 0.5
    %v682 = vrot.slane %v469, 7
    %v683 = vrot.slane %v470, 7
    %v686 = vmul.f32 %v678, %v682
    %v687 = vmul.f32 %v679, %v683
    %690 = vrot.lane.b32.xlu0 %v674, 104
    %v691 = vpop.permute.xlu0 %690
    %692 = vrot.lane.b32.xlu0 %v675, 104
    %v693 = vpop.permute.xlu0 %692
    %v696 = vmul.f32 %v678, %v691
    %v697 = vmul.f32 %v679, %v693
    %700 = vrot.lane.b32.xlu0 %v696, 8
    %v701 = vpop.permute.xlu0 %700
    %702 = vrot.lane.b32.xlu0 %v697, 8
    %v703 = vpop.permute.xlu0 %702
    %v706 = vadd.f32 %v686, %v701
    %v707 = vadd.f32 %v687, %v703
    %v708 = vtanh.pop %v706
    %v709 = vtanh.pop %v707
    %712 = vrot.lane.b32.xlu0 %v708, 8
    %v713 = vpop.permute.xlu0 %712
    %714 = vrot.lane.b32.xlu0 %v709, 8
    %v715 = vpop.permute.xlu0 %714
    %v718 = vmul.f32 %v678, %v713
    %v719 = vmul.f32 %v679, %v715
    %v722 = vrot.slane %v719, 7
    %vm723 = vcmask 1043459
    %v724 = vsel %vm723, %v722, %v718
    %725 = vrot.lane.b32.xlu0 %v724, 112
    %v726 = vpop.permute.xlu0 %725
    %v729 = vrot.slane %v590, 6
    %730 = vrot.lane.b32.xlu0 %v729, 120
    %v731 = vpop.permute.xlu0 %730
    %v733 = vsel %vm136, %v726, %v731
    %v735 = vrot.slane %v733, 2
    %v736 = vsel %vm265, %v735, 0
    %738 = vmatprep.subr.mxu0 0.0
    %739 = vmatpush1.msra.mxu0 %v31
    %740 = vmatprep.subr.mxu0 0.0
    %741 = vmatpush1.msra.mxu0 %v32
    %742 = vmatprep.subr.mxu0 0.0
    %743 = vmatpush1.msra.mxu0 0.0
    %744 = vmatprep.subr.mxu0 0.0
    %745 = vmatpush1.msra.mxu0 0.0
    %746 = vmatprep.subr.mxu0 0.0
    %747 = vmatpush1.msra.mxu0 0.0
    %748 = vmatprep.subr.mxu0 0.0
    %749 = vmatpush1.msra.mxu0 0.0
    %750 = vmatprep.subr.mxu0 0.0
    %751 = vmatpush1.msra.mxu0 0.0
    %752 = vmatprep.subr.mxu0 0.0
    %753 = vmatpush1.msra.mxu0 0.0
    %754 = vmatprep.subr.mxu0 0.0
    %755 = vmatpush1.msra.mxu0 0.0
    %756 = vmatprep.subr.mxu0 0.0
    %757 = vmatpush1.msra.mxu0 0.0
    %758 = vmatprep.subr.mxu0 0.0
    %759 = vmatpush1.msra.mxu0 0.0
    %760 = vmatprep.subr.mxu0 0.0
    %761 = vmatpush1.msra.mxu0 0.0
    %762 = vmatprep.subr.mxu0 0.0
    %763 = vmatpush1.msra.mxu0 0.0
    %764 = vmatprep.subr.mxu0 0.0
    %765 = vmatpush1.msra.mxu0 0.0
    %766 = vmatprep.subr.mxu0 0.0
    %767 = vmatpush1.msra.mxu0 0.0
    %768 = vmatprep.subr.mxu0 0.0
    %769 = vmatpush1.msra.mxu0 0.0
    %770 = vmatprep.subr.mxu0 0.0
    %771 = vmatpush1.msra.mxu0 0.0
    %772 = vmatprep.subr.mxu0 0.0
    %773 = vmatpush1.msra.mxu0 0.0
    %774 = vmatprep.subr.mxu0 0.0
    %775 = vmatpush1.msra.mxu0 0.0
    %776 = vmatprep.subr.mxu0 0.0
    %777 = vmatpush1.msra.mxu0 0.0
    %778 = vmatprep.subr.mxu0 0.0
    %779 = vmatpush1.msra.mxu0 0.0
    %780 = vmatprep.subr.mxu0 0.0
    %781 = vmatpush1.msra.mxu0 0.0
    %782 = vmatprep.subr.mxu0 0.0
    %783 = vmatpush1.msra.mxu0 0.0
    %784 = vmatprep.subr.mxu0 0.0
    %785 = vmatpush1.msra.mxu0 0.0
    %786 = vmatprep.subr.mxu0 0.0
    %787 = vmatpush1.msra.mxu0 0.0
    %788 = vmatprep.subr.mxu0 0.0
    %789 = vmatpush1.msra.mxu0 0.0
    %790 = vmatprep.subr.mxu0 0.0
    %791 = vmatpush1.msra.mxu0 0.0
    %792 = vmatprep.subr.mxu0 0.0
    %793 = vmatpush1.msra.mxu0 0.0
    %794 = vmatprep.subr.mxu0 0.0
    %795 = vmatpush1.msra.mxu0 0.0
    %796 = vmatprep.subr.mxu0 0.0
    %797 = vmatpush1.msra.mxu0 0.0
    %798 = vmatprep.subr.mxu0 0.0
    %799 = vmatpush1.msra.mxu0 0.0
    %800 = vmatprep.subr.mxu0 0.0
    %801 = vmatpush1.msra.mxu0 0.0
    %802 = vmatprep.mubr.f32.mxu0 0.0
    %803 = vmatmul.mubr.f32.gmra.mrb[0].mxu0 %v736
    %v804 = vpop.f32.mrb[0].mxu0
    %v805 = vadd.f32 %v38, %v804
    %v806 = vpop.f32.mrb[0].mxu0
    %807 = vdwg.mxu0
    %v808 = vtanh.pop %v805
    %v809 = vmul.f32 %v808, 0.5
    %v810 = vadd.f32 %v809, 0.5
    %v811 = vmul.f32 %v810, %v584
    %813 = vrot.lane.b32.xlu0 %v808, 104
    %v814 = vpop.permute.xlu0 %813
    %v816 = vmul.f32 %v810, %v814
    %818 = vrot.lane.b32.xlu0 %v816, 8
    %v819 = vpop.permute.xlu0 %818
    %v821 = vadd.f32 %v811, %v819
    %v822 = vtanh.pop %v821
    %824 = vrot.lane.b32.xlu0 %v822, 8
    %v825 = vpop.permute.xlu0 %824
    %v827 = vmul.f32 %v810, %v825
    %v828 = vrot.slane %v718, 2
    %v829 = vrot.slane %v719, 1
    %v830 = vsel %vm259, %v829, %v828
    %831 = vrot.lane.b32.xlu0 %v830, 112
    %v832 = vpop.permute.xlu0 %831
    %v833 = vsel %vm136, %v832, 0
    %835 = vmatprep.subr.mxu0 0.0
    %836 = vmatpush1.msra.mxu0 %v30
    %837 = vmatprep.subr.mxu0 0.0
    %838 = vmatpush1.msra.mxu0 0.0
    %839 = vmatprep.subr.mxu0 0.0
    %840 = vmatpush1.msra.mxu0 0.0
    %841 = vmatprep.subr.mxu0 0.0
    %842 = vmatpush1.msra.mxu0 0.0
    %843 = vmatprep.subr.mxu0 0.0
    %844 = vmatpush1.msra.mxu0 0.0
    %845 = vmatprep.subr.mxu0 0.0
    %846 = vmatpush1.msra.mxu0 0.0
    %847 = vmatprep.subr.mxu0 0.0
    %848 = vmatpush1.msra.mxu0 0.0
    %849 = vmatprep.subr.mxu0 0.0
    %850 = vmatpush1.msra.mxu0 0.0
    %851 = vmatprep.subr.mxu0 0.0
    %852 = vmatpush1.msra.mxu0 0.0
    %853 = vmatprep.subr.mxu0 0.0
    %854 = vmatpush1.msra.mxu0 0.0
    %855 = vmatprep.subr.mxu0 0.0
    %856 = vmatpush1.msra.mxu0 0.0
    %857 = vmatprep.subr.mxu0 0.0
    %858 = vmatpush1.msra.mxu0 0.0
    %859 = vmatprep.subr.mxu0 0.0
    %860 = vmatpush1.msra.mxu0 0.0
    %861 = vmatprep.subr.mxu0 0.0
    %862 = vmatpush1.msra.mxu0 0.0
    %863 = vmatprep.subr.mxu0 0.0
    %864 = vmatpush1.msra.mxu0 0.0
    %865 = vmatprep.subr.mxu0 0.0
    %866 = vmatpush1.msra.mxu0 0.0
    %867 = vmatprep.subr.mxu0 0.0
    %868 = vmatpush1.msra.mxu0 0.0
    %869 = vmatprep.subr.mxu0 0.0
    %870 = vmatpush1.msra.mxu0 0.0
    %871 = vmatprep.subr.mxu0 0.0
    %872 = vmatpush1.msra.mxu0 0.0
    %873 = vmatprep.subr.mxu0 0.0
    %874 = vmatpush1.msra.mxu0 0.0
    %875 = vmatprep.subr.mxu0 0.0
    %876 = vmatpush1.msra.mxu0 0.0
    %877 = vmatprep.subr.mxu0 0.0
    %878 = vmatpush1.msra.mxu0 0.0
    %879 = vmatprep.subr.mxu0 0.0
    %880 = vmatpush1.msra.mxu0 0.0
    %881 = vmatprep.subr.mxu0 0.0
    %882 = vmatpush1.msra.mxu0 0.0
    %883 = vmatprep.subr.mxu0 0.0
    %884 = vmatpush1.msra.mxu0 0.0
    %885 = vmatprep.subr.mxu0 0.0
    %886 = vmatpush1.msra.mxu0 0.0
    %887 = vmatprep.subr.mxu0 0.0
    %888 = vmatpush1.msra.mxu0 0.0
    %889 = vmatprep.subr.mxu0 0.0
    %890 = vmatpush1.msra.mxu0 0.0
    %891 = vmatprep.subr.mxu0 0.0
    %892 = vmatpush1.msra.mxu0 0.0
    %893 = vmatprep.subr.mxu0 0.0
    %894 = vmatpush1.msra.mxu0 0.0
    %895 = vmatprep.subr.mxu0 0.0
    %896 = vmatpush1.msra.mxu0 0.0
    %897 = vmatprep.subr.mxu0 0.0
    %898 = vmatpush1.msra.mxu0 0.0
    %899 = vmatprep.mubr.f32.mxu0 0.0
    %900 = vmatmul.mubr.f32.gmra.mrb[0].mxu0 %v833
    %v901 = vpop.f32.mrb[0].mxu0
    %v902 = vadd.f32 0.0, %v901
    %v903 = vpop.f32.mrb[0].mxu0
    %904 = vdwg.mxu0
    %v906 = vrot.slane %v902, 5
    %v907 = vrot.slane %v902, 6
    %v910 = vadd.f32 %v128, %v906
    %v911 = vadd.f32 %v133, %v907
    %v912 = vtanh.pop %v910
    %v913 = vtanh.pop %v911
    %v914 = vmul.f32 %v912, 0.5
    %v915 = vmul.f32 %v913, 0.5
    %v916 = vadd.f32 %v914, 0.5
    %v917 = vadd.f32 %v915, 0.5
    %v920 = vrot.slane %v706, 7
    %v921 = vrot.slane %v707, 7
    %v924 = vmul.f32 %v916, %v920
    %v925 = vmul.f32 %v917, %v921
    %928 = vrot.lane.b32.xlu0 %v912, 104
    %v929 = vpop.permute.xlu0 %928
    %930 = vrot.lane.b32.xlu0 %v913, 104
    %v931 = vpop.permute.xlu0 %930
    %v934 = vmul.f32 %v916, %v929
    %v935 = vmul.f32 %v917, %v931
    %938 = vrot.lane.b32.xlu0 %v934, 8
    %v939 = vpop.permute.xlu0 %938
    %940 = vrot.lane.b32.xlu0 %v935, 8
    %v941 = vpop.permute.xlu0 %940
    %v944 = vadd.f32 %v924, %v939
    %v945 = vadd.f32 %v925, %v941
    %v946 = vtanh.pop %v944
    %v947 = vtanh.pop %v945
    %950 = vrot.lane.b32.xlu0 %v946, 8
    %v951 = vpop.permute.xlu0 %950
    %952 = vrot.lane.b32.xlu0 %v947, 8
    %v953 = vpop.permute.xlu0 %952
    %v956 = vmul.f32 %v916, %v951
    %v957 = vmul.f32 %v917, %v953
    %v960 = vrot.slane %v957, 7
    %vm961 = vcmask 1044484
    %v962 = vsel %vm961, %v960, %v956
    %963 = vrot.lane.b32.xlu0 %v962, 112
    %v964 = vpop.permute.xlu0 %963
    %v967 = vrot.slane %v827, 5
    %968 = vrot.lane.b32.xlu0 %v967, 120
    %v969 = vpop.permute.xlu0 %968
    %v971 = vsel %vm136, %v964, %v969
    %v973 = vrot.slane %v971, 3
    %v974 = vsel %vm265, %v973, 0
    %976 = vmatprep.subr.mxu0 0.0
    %977 = vmatpush1.msra.mxu0 %v31
    %978 = vmatprep.subr.mxu0 0.0
    %979 = vmatpush1.msra.mxu0 %v32
    %980 = vmatprep.subr.mxu0 0.0
    %981 = vmatpush1.msra.mxu0 0.0
    %982 = vmatprep.subr.mxu0 0.0
    %983 = vmatpush1.msra.mxu0 0.0
    %984 = vmatprep.subr.mxu0 0.0
    %985 = vmatpush1.msra.mxu0 0.0
    %986 = vmatprep.subr.mxu0 0.0
    %987 = vmatpush1.msra.mxu0 0.0
    %988 = vmatprep.subr.mxu0 0.0
    %989 = vmatpush1.msra.mxu0 0.0
    %990 = vmatprep.subr.mxu0 0.0
    %991 = vmatpush1.msra.mxu0 0.0
    %992 = vmatprep.subr.mxu0 0.0
    %993 = vmatpush1.msra.mxu0 0.0
    %994 = vmatprep.subr.mxu0 0.0
    %995 = vmatpush1.msra.mxu0 0.0
    %996 = vmatprep.subr.mxu0 0.0
    %997 = vmatpush1.msra.mxu0 0.0
    %998 = vmatprep.subr.mxu0 0.0
    %999 = vmatpush1.msra.mxu0 0.0
    %1000 = vmatprep.subr.mxu0 0.0
    %1001 = vmatpush1.msra.mxu0 0.0
    %1002 = vmatprep.subr.mxu0 0.0
    %1003 = vmatpush1.msra.mxu0 0.0
    %1004 = vmatprep.subr.mxu0 0.0
    %1005 = vmatpush1.msra.mxu0 0.0
    %1006 = vmatprep.subr.mxu0 0.0
    %1007 = vmatpush1.msra.mxu0 0.0
    %1008 = vmatprep.subr.mxu0 0.0
    %1009 = vmatpush1.msra.mxu0 0.0
    %1010 = vmatprep.subr.mxu0 0.0
    %1011 = vmatpush1.msra.mxu0 0.0
    %1012 = vmatprep.subr.mxu0 0.0
    %1013 = vmatpush1.msra.mxu0 0.0
    %1014 = vmatprep.subr.mxu0 0.0
    %1015 = vmatpush1.msra.mxu0 0.0
    %1016 = vmatprep.subr.mxu0 0.0
    %1017 = vmatpush1.msra.mxu0 0.0
    %1018 = vmatprep.subr.mxu0 0.0
    %1019 = vmatpush1.msra.mxu0 0.0
    %1020 = vmatprep.subr.mxu0 0.0
    %1021 = vmatpush1.msra.mxu0 0.0
    %1022 = vmatprep.subr.mxu0 0.0
    %1023 = vmatpush1.msra.mxu0 0.0
    %1024 = vmatprep.subr.mxu0 0.0
    %1025 = vmatpush1.msra.mxu0 0.0
    %1026 = vmatprep.subr.mxu0 0.0
    %1027 = vmatpush1.msra.mxu0 0.0
    %1028 = vmatprep.subr.mxu0 0.0
    %1029 = vmatpush1.msra.mxu0 0.0
    %1030 = vmatprep.subr.mxu0 0.0
    %1031 = vmatpush1.msra.mxu0 0.0
    %1032 = vmatprep.subr.mxu0 0.0
    %1033 = vmatpush1.msra.mxu0 0.0
    %1034 = vmatprep.subr.mxu0 0.0
    %1035 = vmatpush1.msra.mxu0 0.0
    %1036 = vmatprep.subr.mxu0 0.0
    %1037 = vmatpush1.msra.mxu0 0.0
    %1038 = vmatprep.subr.mxu0 0.0
    %1039 = vmatpush1.msra.mxu0 0.0
    %1040 = vmatprep.mubr.f32.mxu0 0.0
    %1041 = vmatmul.mubr.f32.gmra.mrb[0].mxu0 %v974
    %v1042 = vpop.f32.mrb[0].mxu0
    %v1043 = vadd.f32 %v38, %v1042
    %v1044 = vpop.f32.mrb[0].mxu0
    %1045 = vdwg.mxu0
    %v1046 = vtanh.pop %v1043
    %v1047 = vmul.f32 %v1046, 0.5
    %v1048 = vadd.f32 %v1047, 0.5
    %v1049 = vmul.f32 %v1048, %v821
    %1051 = vrot.lane.b32.xlu0 %v1046, 104
    %v1052 = vpop.permute.xlu0 %1051
    %v1054 = vmul.f32 %v1048, %v1052
    %1056 = vrot.lane.b32.xlu0 %v1054, 8
    %v1057 = vpop.permute.xlu0 %1056
    %v1059 = vadd.f32 %v1049, %v1057
    %v1060 = vtanh.pop %v1059
    %1062 = vrot.lane.b32.xlu0 %v1060, 8
    %v1063 = vpop.permute.xlu0 %1062
    %v1065 = vmul.f32 %v1048, %v1063
    %v1066 = vrot.slane %v956, 3
    %v1067 = vrot.slane %v957, 2
    %v1068 = vsel %vm259, %v1067, %v1066
    %1069 = vrot.lane.b32.xlu0 %v1068, 112
    %v1070 = vpop.permute.xlu0 %1069
    %v1071 = vsel %vm136, %v1070, 0
    %1073 = vmatprep.subr.mxu0 0.0
    %1074 = vmatpush1.msra.mxu0 %v30
    %1075 = vmatprep.subr.mxu0 0.0
    %1076 = vmatpush1.msra.mxu0 0.0
    %1077 = vmatprep.subr.mxu0 0.0
    %1078 = vmatpush1.msra.mxu0 0.0
    %1079 = vmatprep.subr.mxu0 0.0
    %1080 = vmatpush1.msra.mxu0 0.0
    %1081 = vmatprep.subr.mxu0 0.0
    %1082 = vmatpush1.msra.mxu0 0.0
    %1083 = vmatprep.subr.mxu0 0.0
    %1084 = vmatpush1.msra.mxu0 0.0
    %1085 = vmatprep.subr.mxu0 0.0
    %1086 = vmatpush1.msra.mxu0 0.0
    %1087 = vmatprep.subr.mxu0 0.0
    %1088 = vmatpush1.msra.mxu0 0.0
    %1089 = vmatprep.subr.mxu0 0.0
    %1090 = vmatpush1.msra.mxu0 0.0
    %1091 = vmatprep.subr.mxu0 0.0
    %1092 = vmatpush1.msra.mxu0 0.0
    %1093 = vmatprep.subr.mxu0 0.0
    %1094 = vmatpush1.msra.mxu0 0.0
    %1095 = vmatprep.subr.mxu0 0.0
    %1096 = vmatpush1.msra.mxu0 0.0
    %1097 = vmatprep.subr.mxu0 0.0
    %1098 = vmatpush1.msra.mxu0 0.0
    %1099 = vmatprep.subr.mxu0 0.0
    %1100 = vmatpush1.msra.mxu0 0.0
    %1101 = vmatprep.subr.mxu0 0.0
    %1102 = vmatpush1.msra.mxu0 0.0
    %1103 = vmatprep.subr.mxu0 0.0
    %1104 = vmatpush1.msra.mxu0 0.0
    %1105 = vmatprep.subr.mxu0 0.0
    %1106 = vmatpush1.msra.mxu0 0.0
    %1107 = vmatprep.subr.mxu0 0.0
    %1108 = vmatpush1.msra.mxu0 0.0
    %1109 = vmatprep.subr.mxu0 0.0
    %1110 = vmatpush1.msra.mxu0 0.0
    %1111 = vmatprep.subr.mxu0 0.0
    %1112 = vmatpush1.msra.mxu0 0.0
    %1113 = vmatprep.subr.mxu0 0.0
    %1114 = vmatpush1.msra.mxu0 0.0
    %1115 = vmatprep.subr.mxu0 0.0
    %1116 = vmatpush1.msra.mxu0 0.0
    %1117 = vmatprep.subr.mxu0 0.0
    %1118 = vmatpush1.msra.mxu0 0.0
    %1119 = vmatprep.subr.mxu0 0.0
    %1120 = vmatpush1.msra.mxu0 0.0
    %1121 = vmatprep.subr.mxu0 0.0
    %1122 = vmatpush1.msra.mxu0 0.0
    %1123 = vmatprep.subr.mxu0 0.0
    %1124 = vmatpush1.msra.mxu0 0.0
    %1125 = vmatprep.subr.mxu0 0.0
    %1126 = vmatpush1.msra.mxu0 0.0
    %1127 = vmatprep.subr.mxu0 0.0
    %1128 = vmatpush1.msra.mxu0 0.0
    %1129 = vmatprep.subr.mxu0 0.0
    %1130 = vmatpush1.msra.mxu0 0.0
    %1131 = vmatprep.subr.mxu0 0.0
    %1132 = vmatpush1.msra.mxu0 0.0
    %1133 = vmatprep.subr.mxu0 0.0
    %1134 = vmatpush1.msra.mxu0 0.0
    %1135 = vmatprep.subr.mxu0 0.0
    %1136 = vmatpush1.msra.mxu0 0.0
    %1137 = vmatprep.mubr.f32.mxu0 0.0
    %1138 = vmatmul.mubr.f32.gmra.mrb[0].mxu0 %v1071
    %v1139 = vpop.f32.mrb[0].mxu0
    %v1140 = vadd.f32 0.0, %v1139
    %v1141 = vpop.f32.mrb[0].mxu0
    %1142 = vdwg.mxu0
    %v1144 = vrot.slane %v1140, 4
    %v1145 = vrot.slane %v1140, 5
    %v1148 = vadd.f32 %v128, %v1144
    %v1149 = vadd.f32 %v133, %v1145
    %v1150 = vtanh.pop %v1148
    %v1151 = vtanh.pop %v1149
    %v1152 = vmul.f32 %v1150, 0.5
    %v1153 = vmul.f32 %v1151, 0.5
    %v1154 = vadd.f32 %v1152, 0.5
    %v1155 = vadd.f32 %v1153, 0.5
    %v1158 = vrot.slane %v944, 7
    %v1159 = vrot.slane %v945, 7
    %v1162 = vmul.f32 %v1154, %v1158
    %v1163 = vmul.f32 %v1155, %v1159
    %1166 = vrot.lane.b32.xlu0 %v1150, 104
    %v1167 = vpop.permute.xlu0 %1166
    %1168 = vrot.lane.b32.xlu0 %v1151, 104
    %v1169 = vpop.permute.xlu0 %1168
    %v1172 = vmul.f32 %v1154, %v1167
    %v1173 = vmul.f32 %v1155, %v1169
    %1176 = vrot.lane.b32.xlu0 %v1172, 8
    %v1177 = vpop.permute.xlu0 %1176
    %1178 = vrot.lane.b32.xlu0 %v1173, 8
    %v1179 = vpop.permute.xlu0 %1178
    %v1182 = vadd.f32 %v1162, %v1177
    %v1183 = vadd.f32 %v1163, %v1179
    %v1184 = vtanh.pop %v1182
    %v1185 = vtanh.pop %v1183
    %1188 = vrot.lane.b32.xlu0 %v1184, 8
    %v1189 = vpop.permute.xlu0 %1188
    %1190 = vrot.lane.b32.xlu0 %v1185, 8
    %v1191 = vpop.permute.xlu0 %1190
    %v1194 = vmul.f32 %v1154, %v1189
    %v1195 = vmul.f32 %v1155, %v1191
    %v1198 = vrot.slane %v1195, 7
    %vm1199 = vcmask 1045509
    %v1200 = vsel %vm1199, %v1198, %v1194
    %1201 = vrot.lane.b32.xlu0 %v1200, 112
    %v1202 = vpop.permute.xlu0 %1201
    %v1205 = vrot.slane %v1065, 4
    %1206 = vrot.lane.b32.xlu0 %v1205, 120
    %v1207 = vpop.permute.xlu0 %1206
    %v1209 = vsel %vm136, %v1202, %v1207
    %v1211 = vrot.slane %v1209, 4
    %v1212 = vsel %vm265, %v1211, 0
    %1214 = vmatprep.subr.mxu0 0.0
    %1215 = vmatpush1.msra.mxu0 %v31
    %1216 = vmatprep.subr.mxu0 0.0
    %1217 = vmatpush1.msra.mxu0 %v32
    %1218 = vmatprep.subr.mxu0 0.0
    %1219 = vmatpush1.msra.mxu0 0.0
    %1220 = vmatprep.subr.mxu0 0.0
    %1221 = vmatpush1.msra.mxu0 0.0
    %1222 = vmatprep.subr.mxu0 0.0
    %1223 = vmatpush1.msra.mxu0 0.0
    %1224 = vmatprep.subr.mxu0 0.0
    %1225 = vmatpush1.msra.mxu0 0.0
    %1226 = vmatprep.subr.mxu0 0.0
    %1227 = vmatpush1.msra.mxu0 0.0
    %1228 = vmatprep.subr.mxu0 0.0
    %1229 = vmatpush1.msra.mxu0 0.0
    %1230 = vmatprep.subr.mxu0 0.0
    %1231 = vmatpush1.msra.mxu0 0.0
    %1232 = vmatprep.subr.mxu0 0.0
    %1233 = vmatpush1.msra.mxu0 0.0
    %1234 = vmatprep.subr.mxu0 0.0
    %1235 = vmatpush1.msra.mxu0 0.0
    %1236 = vmatprep.subr.mxu0 0.0
    %1237 = vmatpush1.msra.mxu0 0.0
    %1238 = vmatprep.subr.mxu0 0.0
    %1239 = vmatpush1.msra.mxu0 0.0
    %1240 = vmatprep.subr.mxu0 0.0
    %1241 = vmatpush1.msra.mxu0 0.0
    %1242 = vmatprep.subr.mxu0 0.0
    %1243 = vmatpush1.msra.mxu0 0.0
    %1244 = vmatprep.subr.mxu0 0.0
    %1245 = vmatpush1.msra.mxu0 0.0
    %1246 = vmatprep.subr.mxu0 0.0
    %1247 = vmatpush1.msra.mxu0 0.0
    %1248 = vmatprep.subr.mxu0 0.0
    %1249 = vmatpush1.msra.mxu0 0.0
    %1250 = vmatprep.subr.mxu0 0.0
    %1251 = vmatpush1.msra.mxu0 0.0
    %1252 = vmatprep.subr.mxu0 0.0
    %1253 = vmatpush1.msra.mxu0 0.0
    %1254 = vmatprep.subr.mxu0 0.0
    %1255 = vmatpush1.msra.mxu0 0.0
    %1256 = vmatprep.subr.mxu0 0.0
    %1257 = vmatpush1.msra.mxu0 0.0
    %1258 = vmatprep.subr.mxu0 0.0
    %1259 = vmatpush1.msra.mxu0 0.0
    %1260 = vmatprep.subr.mxu0 0.0
    %1261 = vmatpush1.msra.mxu0 0.0
    %1262 = vmatprep.subr.mxu0 0.0
    %1263 = vmatpush1.msra.mxu0 0.0
    %1264 = vmatprep.subr.mxu0 0.0
    %1265 = vmatpush1.msra.mxu0 0.0
    %1266 = vmatprep.subr.mxu0 0.0
    %1267 = vmatpush1.msra.mxu0 0.0
    %1268 = vmatprep.subr.mxu0 0.0
    %1269 = vmatpush1.msra.mxu0 0.0
    %1270 = vmatprep.subr.mxu0 0.0
    %1271 = vmatpush1.msra.mxu0 0.0
    %1272 = vmatprep.subr.mxu0 0.0
    %1273 = vmatpush1.msra.mxu0 0.0
    %1274 = vmatprep.subr.mxu0 0.0
    %1275 = vmatpush1.msra.mxu0 0.0
    %1276 = vmatprep.subr.mxu0 0.0
    %1277 = vmatpush1.msra.mxu0 0.0
    %1278 = vmatprep.mubr.f32.mxu0 0.0
    %1279 = vmatmul.mubr.f32.gmra.mrb[0].mxu0 %v1212
    %v1280 = vpop.f32.mrb[0].mxu0
    %v1281 = vadd.f32 %v38, %v1280
    %v1282 = vpop.f32.mrb[0].mxu0
    %1283 = vdwg.mxu0
    %v1284 = vtanh.pop %v1281
    %v1285 = vmul.f32 %v1284, 0.5
    %v1286 = vadd.f32 %v1285, 0.5
    %v1287 = vmul.f32 %v1286, %v1059
    %1289 = vrot.lane.b32.xlu0 %v1284, 104
    %v1290 = vpop.permute.xlu0 %1289
    %v1292 = vmul.f32 %v1286, %v1290
    %1294 = vrot.lane.b32.xlu0 %v1292, 8
    %v1295 = vpop.permute.xlu0 %1294
    %v1297 = vadd.f32 %v1287, %v1295
    %v1298 = vtanh.pop %v1297
    %1300 = vrot.lane.b32.xlu0 %v1298, 8
    %v1301 = vpop.permute.xlu0 %1300
    %v1303 = vmul.f32 %v1286, %v1301
    %v1304 = vrot.slane %v1194, 4
    %v1305 = vrot.slane %v1195, 3
    %v1306 = vsel %vm259, %v1305, %v1304
    %1307 = vrot.lane.b32.xlu0 %v1306, 112
    %v1308 = vpop.permute.xlu0 %1307
    %v1309 = vsel %vm136, %v1308, 0
    %1311 = vmatprep.subr.mxu0 0.0
    %1312 = vmatpush1.msra.mxu0 %v30
    %1313 = vmatprep.subr.mxu0 0.0
    %1314 = vmatpush1.msra.mxu0 0.0
    %1315 = vmatprep.subr.mxu0 0.0
    %1316 = vmatpush1.msra.mxu0 0.0
    %1317 = vmatprep.subr.mxu0 0.0
    %1318 = vmatpush1.msra.mxu0 0.0
    %1319 = vmatprep.subr.mxu0 0.0
    %1320 = vmatpush1.msra.mxu0 0.0
    %1321 = vmatprep.subr.mxu0 0.0
    %1322 = vmatpush1.msra.mxu0 0.0
    %1323 = vmatprep.subr.mxu0 0.0
    %1324 = vmatpush1.msra.mxu0 0.0
    %1325 = vmatprep.subr.mxu0 0.0
    %1326 = vmatpush1.msra.mxu0 0.0
    %1327 = vmatprep.subr.mxu0 0.0
    %1328 = vmatpush1.msra.mxu0 0.0
    %1329 = vmatprep.subr.mxu0 0.0
    %1330 = vmatpush1.msra.mxu0 0.0
    %1331 = vmatprep.subr.mxu0 0.0
    %1332 = vmatpush1.msra.mxu0 0.0
    %1333 = vmatprep.subr.mxu0 0.0
    %1334 = vmatpush1.msra.mxu0 0.0
    %1335 = vmatprep.subr.mxu0 0.0
    %1336 = vmatpush1.msra.mxu0 0.0
    %1337 = vmatprep.subr.mxu0 0.0
    %1338 = vmatpush1.msra.mxu0 0.0
    %1339 = vmatprep.subr.mxu0 0.0
    %1340 = vmatpush1.msra.mxu0 0.0
    %1341 = vmatprep.subr.mxu0 0.0
    %1342 = vmatpush1.msra.mxu0 0.0
    %1343 = vmatprep.subr.mxu0 0.0
    %1344 = vmatpush1.msra.mxu0 0.0
    %1345 = vmatprep.subr.mxu0 0.0
    %1346 = vmatpush1.msra.mxu0 0.0
    %1347 = vmatprep.subr.mxu0 0.0
    %1348 = vmatpush1.msra.mxu0 0.0
    %1349 = vmatprep.subr.mxu0 0.0
    %1350 = vmatpush1.msra.mxu0 0.0
    %1351 = vmatprep.subr.mxu0 0.0
    %1352 = vmatpush1.msra.mxu0 0.0
    %1353 = vmatprep.subr.mxu0 0.0
    %1354 = vmatpush1.msra.mxu0 0.0
    %1355 = vmatprep.subr.mxu0 0.0
    %1356 = vmatpush1.msra.mxu0 0.0
    %1357 = vmatprep.subr.mxu0 0.0
    %1358 = vmatpush1.msra.mxu0 0.0
    %1359 = vmatprep.subr.mxu0 0.0
    %1360 = vmatpush1.msra.mxu0 0.0
    %1361 = vmatprep.subr.mxu0 0.0
    %1362 = vmatpush1.msra.mxu0 0.0
    %1363 = vmatprep.subr.mxu0 0.0
    %1364 = vmatpush1.msra.mxu0 0.0
    %1365 = vmatprep.subr.mxu0 0.0
    %1366 = vmatpush1.msra.mxu0 0.0
    %1367 = vmatprep.subr.mxu0 0.0
    %1368 = vmatpush1.msra.mxu0 0.0
    %1369 = vmatprep.subr.mxu0 0.0
    %1370 = vmatpush1.msra.mxu0 0.0
    %1371 = vmatprep.subr.mxu0 0.0
    %1372 = vmatpush1.msra.mxu0 0.0
    %1373 = vmatprep.subr.mxu0 0.0
    %1374 = vmatpush1.msra.mxu0 0.0
    %1375 = vmatprep.mubr.f32.mxu0 0.0
    %1376 = vmatmul.mubr.f32.gmra.mrb[0].mxu0 %v1309
    %v1377 = vpop.f32.mrb[0].mxu0
    %v1378 = vadd.f32 0.0, %v1377
    %v1379 = vpop.f32.mrb[0].mxu0
    %1380 = vdwg.mxu0
    %v1382 = vrot.slane %v1378, 3
    %v1383 = vrot.slane %v1378, 4
    %v1386 = vadd.f32 %v128, %v1382
    %v1387 = vadd.f32 %v133, %v1383
    %v1388 = vtanh.pop %v1386
    %v1389 = vtanh.pop %v1387
    %v1390 = vmul.f32 %v1388, 0.5
    %v1391 = vmul.f32 %v1389, 0.5
    %v1392 = vadd.f32 %v1390, 0.5
    %v1393 = vadd.f32 %v1391, 0.5
    %v1396 = vrot.slane %v1182, 7
    %v1397 = vrot.slane %v1183, 7
    %v1400 = vmul.f32 %v1392, %v1396
    %v1401 = vmul.f32 %v1393, %v1397
    %1404 = vrot.lane.b32.xlu0 %v1388, 104
    %v1405 = vpop.permute.xlu0 %1404
    %1406 = vrot.lane.b32.xlu0 %v1389, 104
    %v1407 = vpop.permute.xlu0 %1406
    %v1410 = vmul.f32 %v1392, %v1405
    %v1411 = vmul.f32 %v1393, %v1407
    %1414 = vrot.lane.b32.xlu0 %v1410, 8
    %v1415 = vpop.permute.xlu0 %1414
    %1416 = vrot.lane.b32.xlu0 %v1411, 8
    %v1417 = vpop.permute.xlu0 %1416
    %v1420 = vadd.f32 %v1400, %v1415
    %v1421 = vadd.f32 %v1401, %v1417
    %v1422 = vtanh.pop %v1420
    %v1423 = vtanh.pop %v1421
    %1426 = vrot.lane.b32.xlu0 %v1422, 8
    %v1427 = vpop.permute.xlu0 %1426
    %1428 = vrot.lane.b32.xlu0 %v1423, 8
    %v1429 = vpop.permute.xlu0 %1428
    %v1432 = vmul.f32 %v1392, %v1427
    %v1433 = vmul.f32 %v1393, %v1429
    %v1436 = vrot.slane %v1433, 7
    %vm1437 = vcmask 1046534
    %v1438 = vsel %vm1437, %v1436, %v1432
    %1439 = vrot.lane.b32.xlu0 %v1438, 112
    %v1440 = vpop.permute.xlu0 %1439
    %v1443 = vrot.slane %v1303, 3
    %1444 = vrot.lane.b32.xlu0 %v1443, 120
    %v1445 = vpop.permute.xlu0 %1444
    %v1447 = vsel %vm136, %v1440, %v1445
    %v1449 = vrot.slane %v1447, 5
    %v1450 = vsel %vm265, %v1449, 0
    %1452 = vmatprep.subr.mxu0 0.0
    %1453 = vmatpush1.msra.mxu0 %v31
    %1454 = vmatprep.subr.mxu0 0.0
    %1455 = vmatpush1.msra.mxu0 %v32
    %1456 = vmatprep.subr.mxu0 0.0
    %1457 = vmatpush1.msra.mxu0 0.0
    %1458 = vmatprep.subr.mxu0 0.0
    %1459 = vmatpush1.msra.mxu0 0.0
    %1460 = vmatprep.subr.mxu0 0.0
    %1461 = vmatpush1.msra.mxu0 0.0
    %1462 = vmatprep.subr.mxu0 0.0
    %1463 = vmatpush1.msra.mxu0 0.0
    %1464 = vmatprep.subr.mxu0 0.0
    %1465 = vmatpush1.msra.mxu0 0.0
    %1466 = vmatprep.subr.mxu0 0.0
    %1467 = vmatpush1.msra.mxu0 0.0
    %1468 = vmatprep.subr.mxu0 0.0
    %1469 = vmatpush1.msra.mxu0 0.0
    %1470 = vmatprep.subr.mxu0 0.0
    %1471 = vmatpush1.msra.mxu0 0.0
    %1472 = vmatprep.subr.mxu0 0.0
    %1473 = vmatpush1.msra.mxu0 0.0
    %1474 = vmatprep.subr.mxu0 0.0
    %1475 = vmatpush1.msra.mxu0 0.0
    %1476 = vmatprep.subr.mxu0 0.0
    %1477 = vmatpush1.msra.mxu0 0.0
    %1478 = vmatprep.subr.mxu0 0.0
    %1479 = vmatpush1.msra.mxu0 0.0
    %1480 = vmatprep.subr.mxu0 0.0
    %1481 = vmatpush1.msra.mxu0 0.0
    %1482 = vmatprep.subr.mxu0 0.0
    %1483 = vmatpush1.msra.mxu0 0.0
    %1484 = vmatprep.subr.mxu0 0.0
    %1485 = vmatpush1.msra.mxu0 0.0
    %1486 = vmatprep.subr.mxu0 0.0
    %1487 = vmatpush1.msra.mxu0 0.0
    %1488 = vmatprep.subr.mxu0 0.0
    %1489 = vmatpush1.msra.mxu0 0.0
    %1490 = vmatprep.subr.mxu0 0.0
    %1491 = vmatpush1.msra.mxu0 0.0
    %1492 = vmatprep.subr.mxu0 0.0
    %1493 = vmatpush1.msra.mxu0 0.0
    %1494 = vmatprep.subr.mxu0 0.0
    %1495 = vmatpush1.msra.mxu0 0.0
    %1496 = vmatprep.subr.mxu0 0.0
    %1497 = vmatpush1.msra.mxu0 0.0
    %1498 = vmatprep.subr.mxu0 0.0
    %1499 = vmatpush1.msra.mxu0 0.0
    %1500 = vmatprep.subr.mxu0 0.0
    %1501 = vmatpush1.msra.mxu0 0.0
    %1502 = vmatprep.subr.mxu0 0.0
    %1503 = vmatpush1.msra.mxu0 0.0
    %1504 = vmatprep.subr.mxu0 0.0
    %1505 = vmatpush1.msra.mxu0 0.0
    %1506 = vmatprep.subr.mxu0 0.0
    %1507 = vmatpush1.msra.mxu0 0.0
    %1508 = vmatprep.subr.mxu0 0.0
    %1509 = vmatpush1.msra.mxu0 0.0
    %1510 = vmatprep.subr.mxu0 0.0
    %1511 = vmatpush1.msra.mxu0 0.0
    %1512 = vmatprep.subr.mxu0 0.0
    %1513 = vmatpush1.msra.mxu0 0.0
    %1514 = vmatprep.subr.mxu0 0.0
    %1515 = vmatpush1.msra.mxu0 0.0
    %1516 = vmatprep.mubr.f32.mxu0 0.0
    %1517 = vmatmul.mubr.f32.gmra.mrb[0].mxu0 %v1450
    %v1518 = vpop.f32.mrb[0].mxu0
    %v1519 = vadd.f32 %v38, %v1518
    %v1520 = vpop.f32.mrb[0].mxu0
    %1521 = vdwg.mxu0
    %v1522 = vtanh.pop %v1519
    %v1523 = vmul.f32 %v1522, 0.5
    %v1524 = vadd.f32 %v1523, 0.5
    %v1525 = vmul.f32 %v1524, %v1297
    %1527 = vrot.lane.b32.xlu0 %v1522, 104
    %v1528 = vpop.permute.xlu0 %1527
    %v1530 = vmul.f32 %v1524, %v1528
    %1532 = vrot.lane.b32.xlu0 %v1530, 8
    %v1533 = vpop.permute.xlu0 %1532
    %v1535 = vadd.f32 %v1525, %v1533
    %v1536 = vtanh.pop %v1535
    %1538 = vrot.lane.b32.xlu0 %v1536, 8
    %v1539 = vpop.permute.xlu0 %1538
    %v1541 = vmul.f32 %v1524, %v1539
    %v1542 = vrot.slane %v1432, 5
    %v1543 = vrot.slane %v1433, 4
    %v1544 = vsel %vm259, %v1543, %v1542
    %1545 = vrot.lane.b32.xlu0 %v1544, 112
    %v1546 = vpop.permute.xlu0 %1545
    %v1547 = vsel %vm136, %v1546, 0
    %1549 = vmatprep.subr.mxu0 0.0
    %1550 = vmatpush1.msra.mxu0 %v30
    %1551 = vmatprep.subr.mxu0 0.0
    %1552 = vmatpush1.msra.mxu0 0.0
    %1553 = vmatprep.subr.mxu0 0.0
    %1554 = vmatpush1.msra.mxu0 0.0
    %1555 = vmatprep.subr.mxu0 0.0
    %1556 = vmatpush1.msra.mxu0 0.0
    %1557 = vmatprep.subr.mxu0 0.0
    %1558 = vmatpush1.msra.mxu0 0.0
    %1559 = vmatprep.subr.mxu0 0.0
    %1560 = vmatpush1.msra.mxu0 0.0
    %1561 = vmatprep.subr.mxu0 0.0
    %1562 = vmatpush1.msra.mxu0 0.0
    %1563 = vmatprep.subr.mxu0 0.0
    %1564 = vmatpush1.msra.mxu0 0.0
    %1565 = vmatprep.subr.mxu0 0.0
    %1566 = vmatpush1.msra.mxu0 0.0
    %1567 = vmatprep.subr.mxu0 0.0
    %1568 = vmatpush1.msra.mxu0 0.0
    %1569 = vmatprep.subr.mxu0 0.0
    %1570 = vmatpush1.msra.mxu0 0.0
    %1571 = vmatprep.subr.mxu0 0.0
    %1572 = vmatpush1.msra.mxu0 0.0
    %1573 = vmatprep.subr.mxu0 0.0
    %1574 = vmatpush1.msra.mxu0 0.0
    %1575 = vmatprep.subr.mxu0 0.0
    %1576 = vmatpush1.msra.mxu0 0.0
    %1577 = vmatprep.subr.mxu0 0.0
    %1578 = vmatpush1.msra.mxu0 0.0
    %1579 = vmatprep.subr.mxu0 0.0
    %1580 = vmatpush1.msra.mxu0 0.0
    %1581 = vmatprep.subr.mxu0 0.0
    %1582 = vmatpush1.msra.mxu0 0.0
    %1583 = vmatprep.subr.mxu0 0.0
    %1584 = vmatpush1.msra.mxu0 0.0
    %1585 = vmatprep.subr.mxu0 0.0
    %1586 = vmatpush1.msra.mxu0 0.0
    %1587 = vmatprep.subr.mxu0 0.0
    %1588 = vmatpush1.msra.mxu0 0.0
    %1589 = vmatprep.subr.mxu0 0.0
    %1590 = vmatpush1.msra.mxu0 0.0
    %1591 = vmatprep.subr.mxu0 0.0
    %1592 = vmatpush1.msra.mxu0 0.0
    %1593 = vmatprep.subr.mxu0 0.0
    %1594 = vmatpush1.msra.mxu0 0.0
    %1595 = vmatprep.subr.mxu0 0.0
    %1596 = vmatpush1.msra.mxu0 0.0
    %1597 = vmatprep.subr.mxu0 0.0
    %1598 = vmatpush1.msra.mxu0 0.0
    %1599 = vmatprep.subr.mxu0 0.0
    %1600 = vmatpush1.msra.mxu0 0.0
    %1601 = vmatprep.subr.mxu0 0.0
    %1602 = vmatpush1.msra.mxu0 0.0
    %1603 = vmatprep.subr.mxu0 0.0
    %1604 = vmatpush1.msra.mxu0 0.0
    %1605 = vmatprep.subr.mxu0 0.0
    %1606 = vmatpush1.msra.mxu0 0.0
    %1607 = vmatprep.subr.mxu0 0.0
    %1608 = vmatpush1.msra.mxu0 0.0
    %1609 = vmatprep.subr.mxu0 0.0
    %1610 = vmatpush1.msra.mxu0 0.0
    %1611 = vmatprep.subr.mxu0 0.0
    %1612 = vmatpush1.msra.mxu0 0.0
    %1613 = vmatprep.mubr.f32.mxu0 0.0
    %1614 = vmatmul.mubr.f32.gmra.mrb[0].mxu0 %v1547
    %v1615 = vpop.f32.mrb[0].mxu0
    %v1616 = vadd.f32 0.0, %v1615
    %v1617 = vpop.f32.mrb[0].mxu0
    %1618 = vdwg.mxu0
    %v1620 = vrot.slane %v1616, 2
    %v1621 = vrot.slane %v1616, 3
    %v1624 = vadd.f32 %v128, %v1620
    %v1625 = vadd.f32 %v133, %v1621
    %v1626 = vtanh.pop %v1624
    %v1627 = vtanh.pop %v1625
    %v1628 = vmul.f32 %v1626, 0.5
    %v1629 = vmul.f32 %v1627, 0.5
    %v1630 = vadd.f32 %v1628, 0.5
    %v1631 = vadd.f32 %v1629, 0.5
    %v1634 = vrot.slane %v1420, 7
    %v1635 = vrot.slane %v1421, 7
    %v1638 = vmul.f32 %v1630, %v1634
    %v1639 = vmul.f32 %v1631, %v1635
    %1642 = vrot.lane.b32.xlu0 %v1626, 104
    %v1643 = vpop.permute.xlu0 %1642
    %1644 = vrot.lane.b32.xlu0 %v1627, 104
    %v1645 = vpop.permute.xlu0 %1644
    %v1648 = vmul.f32 %v1630, %v1643
    %v1649 = vmul.f32 %v1631, %v1645
    %1652 = vrot.lane.b32.xlu0 %v1648, 8
    %v1653 = vpop.permute.xlu0 %1652
    %1654 = vrot.lane.b32.xlu0 %v1649, 8
    %v1655 = vpop.permute.xlu0 %1654
    %v1658 = vadd.f32 %v1638, %v1653
    %v1659 = vadd.f32 %v1639, %v1655
    %v1660 = vtanh.pop %v1658
    %v1661 = vtanh.pop %v1659
    %1664 = vrot.lane.b32.xlu0 %v1660, 8
    %v1665 = vpop.permute.xlu0 %1664
    %1666 = vrot.lane.b32.xlu0 %v1661, 8
    %v1667 = vpop.permute.xlu0 %1666
    %v1670 = vmul.f32 %v1630, %v1665
    %v1671 = vmul.f32 %v1631, %v1667
    %v1674 = vrot.slane %v1671, 7
    %vm1675 = vcmask 1047559
    %v1676 = vsel %vm1675, %v1674, %v1670
    %1677 = vrot.lane.b32.xlu0 %v1676, 112
    %v1678 = vpop.permute.xlu0 %1677
    %v1681 = vrot.slane %v1541, 2
    %1682 = vrot.lane.b32.xlu0 %v1681, 120
    %v1683 = vpop.permute.xlu0 %1682
    %v1685 = vsel %vm136, %v1678, %v1683
    %v1687 = vrot.slane %v1685, 6
    %v1688 = vsel %vm265, %v1687, 0
    %1690 = vmatprep.subr.mxu0 0.0
    %1691 = vmatpush1.msra.mxu0 %v31
    %1692 = vmatprep.subr.mxu0 0.0
    %1693 = vmatpush1.msra.mxu0 %v32
    %1694 = vmatprep.subr.mxu0 0.0
    %1695 = vmatpush1.msra.mxu0 0.0
    %1696 = vmatprep.subr.mxu0 0.0
    %1697 = vmatpush1.msra.mxu0 0.0
    %1698 = vmatprep.subr.mxu0 0.0
    %1699 = vmatpush1.msra.mxu0 0.0
    %1700 = vmatprep.subr.mxu0 0.0
    %1701 = vmatpush1.msra.mxu0 0.0
    %1702 = vmatprep.subr.mxu0 0.0
    %1703 = vmatpush1.msra.mxu0 0.0
    %1704 = vmatprep.subr.mxu0 0.0
    %1705 = vmatpush1.msra.mxu0 0.0
    %1706 = vmatprep.subr.mxu0 0.0
    %1707 = vmatpush1.msra.mxu0 0.0
    %1708 = vmatprep.subr.mxu0 0.0
    %1709 = vmatpush1.msra.mxu0 0.0
    %1710 = vmatprep.subr.mxu0 0.0
    %1711 = vmatpush1.msra.mxu0 0.0
    %1712 = vmatprep.subr.mxu0 0.0
    %1713 = vmatpush1.msra.mxu0 0.0
    %1714 = vmatprep.subr.mxu0 0.0
    %1715 = vmatpush1.msra.mxu0 0.0
    %1716 = vmatprep.subr.mxu0 0.0
    %1717 = vmatpush1.msra.mxu0 0.0
    %1718 = vmatprep.subr.mxu0 0.0
    %1719 = vmatpush1.msra.mxu0 0.0
    %1720 = vmatprep.subr.mxu0 0.0
    %1721 = vmatpush1.msra.mxu0 0.0
    %1722 = vmatprep.subr.mxu0 0.0
    %1723 = vmatpush1.msra.mxu0 0.0
    %1724 = vmatprep.subr.mxu0 0.0
    %1725 = vmatpush1.msra.mxu0 0.0
    %1726 = vmatprep.subr.mxu0 0.0
    %1727 = vmatpush1.msra.mxu0 0.0
    %1728 = vmatprep.subr.mxu0 0.0
    %1729 = vmatpush1.msra.mxu0 0.0
    %1730 = vmatprep.subr.mxu0 0.0
    %1731 = vmatpush1.msra.mxu0 0.0
    %1732 = vmatprep.subr.mxu0 0.0
    %1733 = vmatpush1.msra.mxu0 0.0
    %1734 = vmatprep.subr.mxu0 0.0
    %1735 = vmatpush1.msra.mxu0 0.0
    %1736 = vmatprep.subr.mxu0 0.0
    %1737 = vmatpush1.msra.mxu0 0.0
    %1738 = vmatprep.subr.mxu0 0.0
    %1739 = vmatpush1.msra.mxu0 0.0
    %1740 = vmatprep.subr.mxu0 0.0
    %1741 = vmatpush1.msra.mxu0 0.0
    %1742 = vmatprep.subr.mxu0 0.0
    %1743 = vmatpush1.msra.mxu0 0.0
    %1744 = vmatprep.subr.mxu0 0.0
    %1745 = vmatpush1.msra.mxu0 0.0
    %1746 = vmatprep.subr.mxu0 0.0
    %1747 = vmatpush1.msra.mxu0 0.0
    %1748 = vmatprep.subr.mxu0 0.0
    %1749 = vmatpush1.msra.mxu0 0.0
    %1750 = vmatprep.subr.mxu0 0.0
    %1751 = vmatpush1.msra.mxu0 0.0
    %1752 = vmatprep.subr.mxu0 0.0
    %1753 = vmatpush1.msra.mxu0 0.0
    %1754 = vmatprep.mubr.f32.mxu0 0.0
    %1755 = vmatmul.mubr.f32.gmra.mrb[0].mxu0 %v1688
    %v1756 = vpop.f32.mrb[0].mxu0
    %v1757 = vadd.f32 %v38, %v1756
    %v1758 = vpop.f32.mrb[0].mxu0
    %1759 = vdwg.mxu0
    %v1760 = vtanh.pop %v1757
    %v1761 = vmul.f32 %v1760, 0.5
    %v1762 = vadd.f32 %v1761, 0.5
    %v1763 = vmul.f32 %v1762, %v1535
    %1765 = vrot.lane.b32.xlu0 %v1760, 104
    %v1766 = vpop.permute.xlu0 %1765
    %v1768 = vmul.f32 %v1762, %v1766
    %1770 = vrot.lane.b32.xlu0 %v1768, 8
    %v1771 = vpop.permute.xlu0 %1770
    %v1773 = vadd.f32 %v1763, %v1771
    %v1774 = vtanh.pop %v1773
    %1776 = vrot.lane.b32.xlu0 %v1774, 8
    %v1777 = vpop.permute.xlu0 %1776
    %v1779 = vmul.f32 %v1762, %v1777
    %v1780 = vrot.slane %v1670, 6
    %v1781 = vrot.slane %v1671, 5
    %v1782 = vsel %vm259, %v1781, %v1780
    %1783 = vrot.lane.b32.xlu0 %v1782, 112
    %v1784 = vpop.permute.xlu0 %1783
    %v1785 = vsel %vm136, %v1784, 0
    %1787 = vmatprep.subr.mxu0 0.0
    %1788 = vmatpush1.msra.mxu0 %v30
    %1789 = vmatprep.subr.mxu0 0.0
    %1790 = vmatpush1.msra.mxu0 0.0
    %1791 = vmatprep.subr.mxu0 0.0
    %1792 = vmatpush1.msra.mxu0 0.0
    %1793 = vmatprep.subr.mxu0 0.0
    %1794 = vmatpush1.msra.mxu0 0.0
    %1795 = vmatprep.subr.mxu0 0.0
    %1796 = vmatpush1.msra.mxu0 0.0
    %1797 = vmatprep.subr.mxu0 0.0
    %1798 = vmatpush1.msra.mxu0 0.0
    %1799 = vmatprep.subr.mxu0 0.0
    %1800 = vmatpush1.msra.mxu0 0.0
    %1801 = vmatprep.subr.mxu0 0.0
    %1802 = vmatpush1.msra.mxu0 0.0
    %1803 = vmatprep.subr.mxu0 0.0
    %1804 = vmatpush1.msra.mxu0 0.0
    %1805 = vmatprep.subr.mxu0 0.0
    %1806 = vmatpush1.msra.mxu0 0.0
    %1807 = vmatprep.subr.mxu0 0.0
    %1808 = vmatpush1.msra.mxu0 0.0
    %1809 = vmatprep.subr.mxu0 0.0
    %1810 = vmatpush1.msra.mxu0 0.0
    %1811 = vmatprep.subr.mxu0 0.0
    %1812 = vmatpush1.msra.mxu0 0.0
    %1813 = vmatprep.subr.mxu0 0.0
    %1814 = vmatpush1.msra.mxu0 0.0
    %1815 = vmatprep.subr.mxu0 0.0
    %1816 = vmatpush1.msra.mxu0 0.0
    %1817 = vmatprep.subr.mxu0 0.0
    %1818 = vmatpush1.msra.mxu0 0.0
    %1819 = vmatprep.subr.mxu0 0.0
    %1820 = vmatpush1.msra.mxu0 0.0
    %1821 = vmatprep.subr.mxu0 0.0
    %1822 = vmatpush1.msra.mxu0 0.0
    %1823 = vmatprep.subr.mxu0 0.0
    %1824 = vmatpush1.msra.mxu0 0.0
    %1825 = vmatprep.subr.mxu0 0.0
    %1826 = vmatpush1.msra.mxu0 0.0
    %1827 = vmatprep.subr.mxu0 0.0
    %1828 = vmatpush1.msra.mxu0 0.0
    %1829 = vmatprep.subr.mxu0 0.0
    %1830 = vmatpush1.msra.mxu0 0.0
    %1831 = vmatprep.subr.mxu0 0.0
    %1832 = vmatpush1.msra.mxu0 0.0
    %1833 = vmatprep.subr.mxu0 0.0
    %1834 = vmatpush1.msra.mxu0 0.0
    %1835 = vmatprep.subr.mxu0 0.0
    %1836 = vmatpush1.msra.mxu0 0.0
    %1837 = vmatprep.subr.mxu0 0.0
    %1838 = vmatpush1.msra.mxu0 0.0
    %1839 = vmatprep.subr.mxu0 0.0
    %1840 = vmatpush1.msra.mxu0 0.0
    %1841 = vmatprep.subr.mxu0 0.0
    %1842 = vmatpush1.msra.mxu0 0.0
    %1843 = vmatprep.subr.mxu0 0.0
    %1844 = vmatpush1.msra.mxu0 0.0
    %1845 = vmatprep.subr.mxu0 0.0
    %1846 = vmatpush1.msra.mxu0 0.0
    %1847 = vmatprep.subr.mxu0 0.0
    %1848 = vmatpush1.msra.mxu0 0.0
    %1849 = vmatprep.subr.mxu0 0.0
    %1850 = vmatpush1.msra.mxu0 0.0
    %1851 = vmatprep.mubr.f32.mxu0 0.0
    %1852 = vmatmul.mubr.f32.gmra.mrb[0].mxu0 %v1785
    %v1853 = vpop.f32.mrb[0].mxu0
    %v1854 = vadd.f32 0.0, %v1853
    %v1855 = vpop.f32.mrb[0].mxu0
    %1856 = vdwg.mxu0
    %v1858 = vrot.slane %v1854, 1
    %v1859 = vrot.slane %v1854, 2
    %v1862 = vadd.f32 %v128, %v1858
    %v1863 = vadd.f32 %v133, %v1859
    %v1864 = vtanh.pop %v1862
    %v1865 = vtanh.pop %v1863
    %v1866 = vmul.f32 %v1864, 0.5
    %v1867 = vmul.f32 %v1865, 0.5
    %v1868 = vadd.f32 %v1866, 0.5
    %v1869 = vadd.f32 %v1867, 0.5
    %v1872 = vrot.slane %v1658, 7
    %v1873 = vrot.slane %v1659, 7
    %v1876 = vmul.f32 %v1868, %v1872
    %v1877 = vmul.f32 %v1869, %v1873
    %1880 = vrot.lane.b32.xlu0 %v1864, 104
    %v1881 = vpop.permute.xlu0 %1880
    %1882 = vrot.lane.b32.xlu0 %v1865, 104
    %v1883 = vpop.permute.xlu0 %1882
    %v1886 = vmul.f32 %v1868, %v1881
    %v1887 = vmul.f32 %v1869, %v1883
    %1890 = vrot.lane.b32.xlu0 %v1886, 8
    %v1891 = vpop.permute.xlu0 %1890
    %1892 = vrot.lane.b32.xlu0 %v1887, 8
    %v1893 = vpop.permute.xlu0 %1892
    %v1896 = vadd.f32 %v1876, %v1891
    %v1897 = vadd.f32 %v1877, %v1893
    %v1898 = vtanh.pop %v1896
    %v1899 = vtanh.pop %v1897
    %1902 = vrot.lane.b32.xlu0 %v1898, 8
    %v1903 = vpop.permute.xlu0 %1902
    %1904 = vrot.lane.b32.xlu0 %v1899, 8
    %v1905 = vpop.permute.xlu0 %1904
    %v1908 = vmul.f32 %v1868, %v1903
    %v1909 = vmul.f32 %v1869, %v1905
    %v1912 = vrot.slane %v1909, 7
    %1913 = vrot.lane.b32.xlu0 %v1908, 112
    %v1914 = vpop.permute.xlu0 %1913
    %1915 = vrot.lane.b32.xlu0 %v1912, 112
    %v1916 = vpop.permute.xlu0 %1915
    %v1920 = vrot.slane %v1779, 1
    %1921 = vrot.lane.b32.xlu0 %v1920, 120
    %v1922 = vpop.permute.xlu0 %1921
    %v1924 = vsel %vm136, %v1914, %v1922
    %v1925 = vsel %vm136, %v1916, %v1922
    %vm1928 = vcmask 1040384
    %v1929 = vrot.slane %v1924, 7
    %v1930 = vrot.slane %v1925, 7
    %v1931 = vsel %vm1928, %v1929, %v1930
    %v1932 = vsel %vm265, %v1931, 0
    %1934 = vmatprep.subr.mxu0 0.0
    %1935 = vmatpush1.msra.mxu0 %v31
    %1936 = vmatprep.subr.mxu0 0.0
    %1937 = vmatpush1.msra.mxu0 %v32
    %1938 = vmatprep.subr.mxu0 0.0
    %1939 = vmatpush1.msra.mxu0 0.0
    %1940 = vmatprep.subr.mxu0 0.0
    %1941 = vmatpush1.msra.mxu0 0.0
    %1942 = vmatprep.subr.mxu0 0.0
    %1943 = vmatpush1.msra.mxu0 0.0
    %1944 = vmatprep.subr.mxu0 0.0
    %1945 = vmatpush1.msra.mxu0 0.0
    %1946 = vmatprep.subr.mxu0 0.0
    %1947 = vmatpush1.msra.mxu0 0.0
    %1948 = vmatprep.subr.mxu0 0.0
    %1949 = vmatpush1.msra.mxu0 0.0
    %1950 = vmatprep.subr.mxu0 0.0
    %1951 = vmatpush1.msra.mxu0 0.0
    %1952 = vmatprep.subr.mxu0 0.0
    %1953 = vmatpush1.msra.mxu0 0.0
    %1954 = vmatprep.subr.mxu0 0.0
    %1955 = vmatpush1.msra.mxu0 0.0
    %1956 = vmatprep.subr.mxu0 0.0
    %1957 = vmatpush1.msra.mxu0 0.0
    %1958 = vmatprep.subr.mxu0 0.0
    %1959 = vmatpush1.msra.mxu0 0.0
    %1960 = vmatprep.subr.mxu0 0.0
    %1961 = vmatpush1.msra.mxu0 0.0
    %1962 = vmatprep.subr.mxu0 0.0
    %1963 = vmatpush1.msra.mxu0 0.0
    %1964 = vmatprep.subr.mxu0 0.0
    %1965 = vmatpush1.msra.mxu0 0.0
    %1966 = vmatprep.subr.mxu0 0.0
    %1967 = vmatpush1.msra.mxu0 0.0
    %1968 = vmatprep.subr.mxu0 0.0
    %1969 = vmatpush1.msra.mxu0 0.0
    %1970 = vmatprep.subr.mxu0 0.0
    %1971 = vmatpush1.msra.mxu0 0.0
    %1972 = vmatprep.subr.mxu0 0.0
    %1973 = vmatpush1.msra.mxu0 0.0
    %1974 = vmatprep.subr.mxu0 0.0
    %1975 = vmatpush1.msra.mxu0 0.0
    %1976 = vmatprep.subr.mxu0 0.0
    %1977 = vmatpush1.msra.mxu0 0.0
    %1978 = vmatprep.subr.mxu0 0.0
    %1979 = vmatpush1.msra.mxu0 0.0
    %1980 = vmatprep.subr.mxu0 0.0
    %1981 = vmatpush1.msra.mxu0 0.0
    %1982 = vmatprep.subr.mxu0 0.0
    %1983 = vmatpush1.msra.mxu0 0.0
    %1984 = vmatprep.subr.mxu0 0.0
    %1985 = vmatpush1.msra.mxu0 0.0
    %1986 = vmatprep.subr.mxu0 0.0
    %1987 = vmatpush1.msra.mxu0 0.0
    %1988 = vmatprep.subr.mxu0 0.0
    %1989 = vmatpush1.msra.mxu0 0.0
    %1990 = vmatprep.subr.mxu0 0.0
    %1991 = vmatpush1.msra.mxu0 0.0
    %1992 = vmatprep.subr.mxu0 0.0
    %1993 = vmatpush1.msra.mxu0 0.0
    %1994 = vmatprep.subr.mxu0 0.0
    %1995 = vmatpush1.msra.mxu0 0.0
    %1996 = vmatprep.subr.mxu0 0.0
    %1997 = vmatpush1.msra.mxu0 0.0
    %1998 = vmatprep.mubr.f32.mxu0 0.0
    %1999 = vmatmul.mubr.f32.gmra.mrb[0].mxu0 %v1932
    %v2000 = vpop.f32.mrb[0].mxu0
    %v2001 = vadd.f32 %v38, %v2000
    %v2002 = vpop.f32.mrb[0].mxu0
    %2003 = vdwg.mxu0
    %v2004 = vtanh.pop %v2001
    %v2005 = vmul.f32 %v2004, 0.5
    %v2006 = vadd.f32 %v2005, 0.5
    %v2007 = vmul.f32 %v2006, %v1773
    %2009 = vrot.lane.b32.xlu0 %v2004, 104
    %v2010 = vpop.permute.xlu0 %2009
    %v2012 = vmul.f32 %v2006, %v2010
    %2014 = vrot.lane.b32.xlu0 %v2012, 8
    %v2015 = vpop.permute.xlu0 %2014
    %v2017 = vadd.f32 %v2007, %v2015
    %v2018 = vtanh.pop %v2017
    %2020 = vrot.lane.b32.xlu0 %v2018, 8
    %v2021 = vpop.permute.xlu0 %2020
    %v2023 = vmul.f32 %v2006, %v2021
    %v2024 = vmax.f32 %v2023, 0.0
    %v2025 = vld [vmem:[%s6] sm:$0xff]
    %v2026 = vld [vmem:[%s7] sm:$0x1]
    %v2028 = vlaneseq
    %v2029 = vshrl.u32 %v2028, 7
    %v2030 = vsub.s32 0, %v2029
    %v2031 = vrot.slane %v2026, %v2030
    %2034 = vrot.lane.b32.xlu0 %v2024, 112
    %v2035 = vpop.permute.xlu0 %2034
    %v2036 = vsel %vm136, %v2035, 0
    %2038 = vmatprep.subr.mxu0 0.0
    %2039 = vmatpush1.msra.mxu0 %v2025
    %2040 = vmatprep.subr.mxu0 0.0
    %2041 = vmatpush1.msra.mxu0 0.0
    %2042 = vmatprep.subr.mxu0 0.0
    %2043 = vmatpush1.msra.mxu0 0.0
    %2044 = vmatprep.subr.mxu0 0.0
    %2045 = vmatpush1.msra.mxu0 0.0
    %2046 = vmatprep.subr.mxu0 0.0
    %2047 = vmatpush1.msra.mxu0 0.0
    %2048 = vmatprep.subr.mxu0 0.0
    %2049 = vmatpush1.msra.mxu0 0.0
    %2050 = vmatprep.subr.mxu0 0.0
    %2051 = vmatpush1.msra.mxu0 0.0
    %2052 = vmatprep.subr.mxu0 0.0
    %2053 = vmatpush1.msra.mxu0 0.0
    %2054 = vmatprep.subr.mxu0 0.0
    %2055 = vmatpush1.msra.mxu0 0.0
    %2056 = vmatprep.subr.mxu0 0.0
    %2057 = vmatpush1.msra.mxu0 0.0
    %2058 = vmatprep.subr.mxu0 0.0
    %2059 = vmatpush1.msra.mxu0 0.0
    %2060 = vmatprep.subr.mxu0 0.0
    %2061 = vmatpush1.msra.mxu0 0.0
    %2062 = vmatprep.subr.mxu0 0.0
    %2063 = vmatpush1.msra.mxu0 0.0
    %2064 = vmatprep.subr.mxu0 0.0
    %2065 = vmatpush1.msra.mxu0 0.0
    %2066 = vmatprep.subr.mxu0 0.0
    %2067 = vmatpush1.msra.mxu0 0.0
    %2068 = vmatprep.subr.mxu0 0.0
    %2069 = vmatpush1.msra.mxu0 0.0
    %2070 = vmatprep.subr.mxu0 0.0
    %2071 = vmatpush1.msra.mxu0 0.0
    %2072 = vmatprep.subr.mxu0 0.0
    %2073 = vmatpush1.msra.mxu0 0.0
    %2074 = vmatprep.subr.mxu0 0.0
    %2075 = vmatpush1.msra.mxu0 0.0
    %2076 = vmatprep.subr.mxu0 0.0
    %2077 = vmatpush1.msra.mxu0 0.0
    %2078 = vmatprep.subr.mxu0 0.0
    %2079 = vmatpush1.msra.mxu0 0.0
    %2080 = vmatprep.subr.mxu0 0.0
    %2081 = vmatpush1.msra.mxu0 0.0
    %2082 = vmatprep.subr.mxu0 0.0
    %2083 = vmatpush1.msra.mxu0 0.0
    %2084 = vmatprep.subr.mxu0 0.0
    %2085 = vmatpush1.msra.mxu0 0.0
    %2086 = vmatprep.subr.mxu0 0.0
    %2087 = vmatpush1.msra.mxu0 0.0
    %2088 = vmatprep.subr.mxu0 0.0
    %2089 = vmatpush1.msra.mxu0 0.0
    %2090 = vmatprep.subr.mxu0 0.0
    %2091 = vmatpush1.msra.mxu0 0.0
    %2092 = vmatprep.subr.mxu0 0.0
    %2093 = vmatpush1.msra.mxu0 0.0
    %2094 = vmatprep.subr.mxu0 0.0
    %2095 = vmatpush1.msra.mxu0 0.0
    %2096 = vmatprep.subr.mxu0 0.0
    %2097 = vmatpush1.msra.mxu0 0.0
    %2098 = vmatprep.subr.mxu0 0.0
    %2099 = vmatpush1.msra.mxu0 0.0
    %2100 = vmatprep.subr.mxu0 0.0
    %2101 = vmatpush1.msra.mxu0 0.0
    %2102 = vmatprep.mubr.f32.mxu0 0.0
    %2103 = vmatmul.mubr.f32.gmra.mrb[0].mxu0 %v2036
    %v2104 = vpop.f32.mrb[0].mxu0
    %v2105 = vadd.f32 %v2031, %v2104
    %v2106 = vpop.f32.mrb[0].mxu0
    %2107 = vdwg.mxu0
    %vm2108 = vcmask 33792
    %2109 = vst.msk [vmem:[#allocation2] sm:$0x3] %vm2108, %v2105
    // Predicated region
    $region34: #{tpu_custom_call.1} parent=1 // pred_check
      _
    $region35: #{tpu_custom_call.1} parent=1 // pred_check_branch
      %2111 = sbr.rel (0) target = $region37
    $region36: #{tpu_custom_call.1} parent=1 // pred_region
      %s2113 = ssub.s32 32, 32
      %2114 = vsyncadd [#allocation3], %s2113
      %s2116 = sshll.u32 [#allocation2], 4
      %s2117 = int_to_ptr.vmem [resolvable:$true] %s2116
      %2119 = dma.vmem_to_hbm [thread:$0]  %s2117, 32, %s8, [#allocation3]
    $region37: #{tpu_custom_call.1} parent=1 // pred_fallthru
      _
    // Predicated region
    $region38: #{tpu_custom_call.1} parent=1 // pred_check
      _
    $region39: #{tpu_custom_call.1} parent=1 // pred_check_branch
      %2121 = sbr.rel (0) target = $region41
    $region40: #{tpu_custom_call.1} parent=1 // pred_region
      %2122 = dma.done [#allocation3], 32
    $region41: #{tpu_custom_call.1} parent=1 // pred_fallthru
      _
    %2123 = vsyncpa [#allocation3], 1

</llo_original>
